<compile_context>
chip_gen: v5e
topology: v5e:2x2
jax: 0.10.0
libtpu: 0.0.40
codegen_flags: <defaults>
</compile_context>

<pallas_src>
import jax
import jax.numpy as jnp
import numpy as np
from jax.experimental import pallas as pl
from jax.experimental.pallas import tpu as pltpu


def make_lstm_kernel(num_layers, hidden_dim, seq_len, batch):
    H, T, B = hidden_dim, seq_len, batch

    def kernel(x_ref, *args):
        # args = [w_ih_0, w_hh_0, b_0, ..., w_ih_{L-1}, w_hh_{L-1}, b_{L-1},
        #         w_fc, b_fc, out_ref]
        layer_refs = args[: 3 * num_layers]
        w_fc_ref, b_fc_ref, out_ref = args[3 * num_layers:]

        # Load per-layer weights once (tiny at H=32: 4 vregs each).  Gate order
        # along the 4H axis is [i, f, o, g] (reordered in the wrapper).
        w_ih = [layer_refs[3 * l][...] for l in range(num_layers)]      # (in_l, 4H)
        w_hh = [layer_refs[3 * l + 1][...] for l in range(num_layers)]  # (H, 4H)
        bias = [layer_refs[3 * l + 2][...] for l in range(num_layers)]  # (1, 4H)

        # Layer-0 input projection for ALL timesteps: one MXU matmul, bias folded.
        # Rows are time-major: row t*B + b.
        gx0 = (
            jnp.dot(x_ref[...], w_ih[0], preferred_element_type=jnp.float32)
            + bias[0]
        )  # (T*B, 4H)

        # Per-layer, per-timestep pre-activations and h/c carries, held as values.
        gx = [[None] * T for _ in range(num_layers)]
        for t in range(T):
            gx[0][t] = gx0[t * B:(t + 1) * B, :]           # (B, 4H)
        h = [None] * num_layers
        c = [None] * num_layers

        def step(l, t):
            # One LSTM cell update for layer l, timestep t.
            if t == 0:
                # h, c start at zero: skip h @ w_hh and the f*c term (exact).
                gates = gx[l][t]
            else:
                gates = gx[l][t] + jnp.dot(
                    h[l], w_hh[l], preferred_element_type=jnp.float32
                )  # (B, 4H)
            sig = jax.nn.sigmoid(gates[:, : 3 * H])        # [i | f | o], one EUP chain
            g_g = jnp.tanh(gates[:, 3 * H:])               # g
            i_g = sig[:, 0 * H:1 * H]
            f_g = sig[:, 1 * H:2 * H]
            o_g = sig[:, 2 * H:3 * H]
            if t == 0:
                c_new = i_g * g_g
            else:
                c_new = f_g * c[l] + i_g * g_g
            h_new = o_g * jnp.tanh(c_new)
            h[l] = h_new
            c[l] = c_new
            # Fused projection into the NEXT layer's pre-activations: layer l+1's
            # step t becomes runnable one wave later, no inter-layer barrier.
            if l + 1 < num_layers:
                gx[l + 1][t] = (
                    jnp.dot(h_new, w_ih[l + 1], preferred_element_type=jnp.float32)
                    + bias[l + 1]
                )

        # Wavefront over (layer, time): at wave s, layer l does timestep t = s - l.
        # Steps of different layers within one wave are independent, so their
        # dependency chains overlap in the unrolled schedule.
        for s in range(T + num_layers - 1):
            for l in range(num_layers):
                t = s - l
                if 0 <= t < T:
                    step(l, t)

        # fc on the top layer's last-timestep hidden state (straight from carry).
        out_ref[...] = (
            jnp.dot(h[num_layers - 1], w_fc_ref[...],
                    preferred_element_type=jnp.float32)
            + b_fc_ref[...]
        )

    return kernel


def _reorder_gates_rows(w):
    """Permute the leading 4H axis from PyTorch order [i,f,g,o] to [i,f,o,g]."""
    H = w.shape[0] // 4
    return jnp.concatenate(
        [w[0:H], w[H:2 * H], w[3 * H:4 * H], w[2 * H:3 * H]], axis=0
    )


def lstm_forward(x, layer_params, fc_w, fc_b):
    """x: (B, T, D) batch-first (PyTorch convention). Returns (B, output_dim)."""
    B, T, D = x.shape
    num_layers = len(layer_params)
    H = layer_params[0][1].shape[1]  # w_hh is (4H, H)
    output_dim = fc_w.shape[0]

    # time-major, flattened to (T*B, D): the kernel's per-timestep slab is a
    # contiguous block of B rows (row t*B + b).
    x_tm = jnp.transpose(x, (1, 0, 2)).reshape(T * B, D).astype(jnp.float32)

    flat_inputs = [x_tm]
    for (w_ih, w_hh, b_ih, b_hh) in layer_params:
        flat_inputs.append(
            jnp.asarray(_reorder_gates_rows(w_ih).T, jnp.float32))   # (in_l, 4H)
        flat_inputs.append(
            jnp.asarray(_reorder_gates_rows(w_hh).T, jnp.float32))   # (H, 4H)
        b = jnp.asarray(b_ih + b_hh, jnp.float32)
        flat_inputs.append(
            _reorder_gates_rows(b[:, None])[:, 0][None, :])          # (1, 4H)
    flat_inputs.append(jnp.asarray(fc_w.T, jnp.float32))             # (H, out)
    flat_inputs.append(jnp.asarray(fc_b[None, :], jnp.float32))      # (1, out)

    kernel = make_lstm_kernel(num_layers, H, T, B)

    vmem_spec = pl.BlockSpec(memory_space=pltpu.MemorySpace.VMEM)
    out = pl.pallas_call(
        kernel,
        out_shape=jax.ShapeDtypeStruct((B, output_dim), jnp.float32),
        in_specs=[vmem_spec] * len(flat_inputs),
        out_specs=vmem_spec,
        # No scratch: gx and the inter-layer hidden states are loop-carried values.
    )(*flat_inputs)
    return out


def lstm_reference(x, layer_params, fc_w, fc_b):
    """Pure-JAX reference of nn.LSTM(batch_first=True) + Linear on last step."""
    B, T, _ = x.shape
    num_layers = len(layer_params)
    H = layer_params[0][1].shape[1]
    inp_seq = x.astype(jnp.float32)
    for l in range(num_layers):
        w_ih, w_hh, b_ih, b_hh = layer_params[l]
        h = jnp.zeros((B, H), jnp.float32)
        c = jnp.zeros((B, H), jnp.float32)
        outs = []
        for t in range(T):
            xt = inp_seq[:, t, :]
            gates = xt @ w_ih.T + b_ih + h @ w_hh.T + b_hh
            i = jax.nn.sigmoid(gates[:, 0 * H:1 * H])
            f = jax.nn.sigmoid(gates[:, 1 * H:2 * H])
            g = jnp.tanh(gates[:, 2 * H:3 * H])
            o = jax.nn.sigmoid(gates[:, 3 * H:4 * H])
            c = f * c + i * g
            h = o * jnp.tanh(c)
            outs.append(h)
        inp_seq = jnp.stack(outs, axis=1)
    last = inp_seq[:, -1, :]
    return last @ fc_w.T + fc_b


if __name__ == "__main__":
    # small shapes implied by the module: (batch, seq, input_dim)
    batch, seq, input_dim = 8, 8, 16
    hidden_dim, num_layers, output_dim = 32, 2, 8

    key = jax.random.PRNGKey(0)
    k_x, k_p = jax.random.split(key)
    x = jax.random.normal(k_x, (batch, seq, input_dim), dtype=jnp.float32)

    # deterministic parameter init (PyTorch-style uniform(-1/sqrt(H), 1/sqrt(H)))
    bound = 1.0 / np.sqrt(hidden_dim)
    layer_params = []
    pkeys = jax.random.split(k_p, num_layers * 4 + 2)
    ki = 0
    for l in range(num_layers):
        in_l = input_dim if l == 0 else hidden_dim
        w_ih = jax.random.uniform(pkeys[ki], (4 * hidden_dim, in_l),
                                  minval=-bound, maxval=bound); ki += 1
        w_hh = jax.random.uniform(pkeys[ki], (4 * hidden_dim, hidden_dim),
                                  minval=-bound, maxval=bound); ki += 1
        b_ih = jax.random.uniform(pkeys[ki], (4 * hidden_dim,),
                                  minval=-bound, maxval=bound); ki += 1
        b_hh = jax.random.uniform(pkeys[ki], (4 * hidden_dim,),
                                  minval=-bound, maxval=bound); ki += 1
        layer_params.append((w_ih, w_hh, b_ih, b_hh))
    fc_w = jax.random.uniform(pkeys[ki], (output_dim, hidden_dim),
                              minval=-bound, maxval=bound); ki += 1
    fc_b = jax.random.uniform(pkeys[ki], (output_dim,),
                              minval=-bound, maxval=bound)

    out = lstm_forward(x, layer_params, fc_w, fc_b)
    out = jax.block_until_ready(out)

    ref = jax.block_until_ready(lstm_reference(x, layer_params, fc_w, fc_b))
    np.testing.assert_allclose(np.asarray(out), np.asarray(ref),
                               rtol=2e-4, atol=2e-4)
    print("KERNEL_OK")
</pallas_src>

<mosaic_0001>
module attributes {stable_mosaic.version = 11 : i64} {
  func.func @kernel(%arg0: memref<64x16xf32, #tpu.memory_space<vmem>>, %arg1: memref<16x128xf32, #tpu.memory_space<vmem>>, %arg2: memref<32x128xf32, #tpu.memory_space<vmem>>, %arg3: memref<1x128xf32, #tpu.memory_space<vmem>>, %arg4: memref<32x128xf32, #tpu.memory_space<vmem>>, %arg5: memref<32x128xf32, #tpu.memory_space<vmem>>, %arg6: memref<1x128xf32, #tpu.memory_space<vmem>>, %arg7: memref<32x8xf32, #tpu.memory_space<vmem>>, %arg8: memref<1x8xf32, #tpu.memory_space<vmem>>, %arg9: memref<8x8xf32, #tpu.memory_space<vmem>>) attributes {dimension_semantics = [], scalar_prefetch = 0 : i64, scratch_operands = 0 : i64, tpu.core_type = #tpu.core_type<tc>} {
    %c0 = arith.constant 0 : index
    %c0_0 = arith.constant 0 : index
    %0 = vector.load %arg1[%c0, %c0_0] : memref<16x128xf32, #tpu.memory_space<vmem>>, vector<16x128xf32>
    %c0_1 = arith.constant 0 : index
    %c0_2 = arith.constant 0 : index
    %1 = vector.load %arg4[%c0_1, %c0_2] : memref<32x128xf32, #tpu.memory_space<vmem>>, vector<32x128xf32>
    %c0_3 = arith.constant 0 : index
    %c0_4 = arith.constant 0 : index
    %2 = vector.load %arg2[%c0_3, %c0_4] : memref<32x128xf32, #tpu.memory_space<vmem>>, vector<32x128xf32>
    %c0_5 = arith.constant 0 : index
    %c0_6 = arith.constant 0 : index
    %3 = vector.load %arg5[%c0_5, %c0_6] : memref<32x128xf32, #tpu.memory_space<vmem>>, vector<32x128xf32>
    %c0_7 = arith.constant 0 : index
    %c0_8 = arith.constant 0 : index
    %4 = vector.load %arg3[%c0_7, %c0_8] : memref<1x128xf32, #tpu.memory_space<vmem>>, vector<1x128xf32>
    %c0_9 = arith.constant 0 : index
    %c0_10 = arith.constant 0 : index
    %5 = vector.load %arg6[%c0_9, %c0_10] : memref<1x128xf32, #tpu.memory_space<vmem>>, vector<1x128xf32>
    %c0_11 = arith.constant 0 : index
    %c0_12 = arith.constant 0 : index
    %6 = vector.load %arg0[%c0_11, %c0_12] : memref<64x16xf32, #tpu.memory_space<vmem>>, vector<64x16xf32>
    %cst = arith.constant dense<0.000000e+00> : vector<64x128xf32>
    %7 = tpu.matmul %6, %0, %cst {dimension_numbers = #tpu.dot_dimension_numbers<[1], [0], [0], [1], [0, 0, 1, 1], [], []>} : vector<64x16xf32>, vector<16x128xf32>, vector<64x128xf32> -> vector<64x128xf32>
    %8 = vector.broadcast %4 : vector<1x128xf32> to vector<64x128xf32>
    %9 = arith.addf %7, %8 : vector<64x128xf32>
    %10 = vector.extract_strided_slice %9 {offsets = [0, 0], sizes = [8, 128], strides = [1, 1]} : vector<64x128xf32> to vector<8x128xf32>
    %11 = vector.extract_strided_slice %9 {offsets = [8, 0], sizes = [8, 128], strides = [1, 1]} : vector<64x128xf32> to vector<8x128xf32>
    %12 = vector.extract_strided_slice %9 {offsets = [16, 0], sizes = [8, 128], strides = [1, 1]} : vector<64x128xf32> to vector<8x128xf32>
    %13 = vector.extract_strided_slice %9 {offsets = [24, 0], sizes = [8, 128], strides = [1, 1]} : vector<64x128xf32> to vector<8x128xf32>
    %14 = vector.extract_strided_slice %9 {offsets = [32, 0], sizes = [8, 128], strides = [1, 1]} : vector<64x128xf32> to vector<8x128xf32>
    %15 = vector.extract_strided_slice %9 {offsets = [40, 0], sizes = [8, 128], strides = [1, 1]} : vector<64x128xf32> to vector<8x128xf32>
    %16 = vector.extract_strided_slice %9 {offsets = [48, 0], sizes = [8, 128], strides = [1, 1]} : vector<64x128xf32> to vector<8x128xf32>
    %17 = vector.extract_strided_slice %9 {offsets = [56, 0], sizes = [8, 128], strides = [1, 1]} : vector<64x128xf32> to vector<8x128xf32>
    %18 = vector.extract_strided_slice %10 {offsets = [0, 0], sizes = [8, 96], strides = [1, 1]} : vector<8x128xf32> to vector<8x96xf32>
    %19 = arith.negf %18 : vector<8x96xf32>
    %20 = math.exp %19 : vector<8x96xf32>
    %cst_13 = arith.constant 1.000000e+00 : f32
    %21 = vector.broadcast %cst_13 : f32 to vector<8x96xf32>
    %22 = arith.addf %21, %20 : vector<8x96xf32>
    %23 = arith.divf %21, %22 : vector<8x96xf32>
    %24 = vector.extract_strided_slice %10 {offsets = [0, 96], sizes = [8, 32], strides = [1, 1]} : vector<8x128xf32> to vector<8x32xf32>
    %25 = math.tanh %24 : vector<8x32xf32>
    %26 = vector.extract_strided_slice %23 {offsets = [0, 0], sizes = [8, 32], strides = [1, 1]} : vector<8x96xf32> to vector<8x32xf32>
    %27 = vector.extract_strided_slice %23 {offsets = [0, 64], sizes = [8, 32], strides = [1, 1]} : vector<8x96xf32> to vector<8x32xf32>
    %28 = arith.mulf %26, %25 : vector<8x32xf32>
    %29 = math.tanh %28 : vector<8x32xf32>
    %30 = arith.mulf %27, %29 : vector<8x32xf32>
    %cst_14 = arith.constant dense<0.000000e+00> : vector<8x128xf32>
    %31 = tpu.matmul %30, %1, %cst_14 {dimension_numbers = #tpu.dot_dimension_numbers<[1], [0], [0], [1], [0, 0, 1, 1], [], []>} : vector<8x32xf32>, vector<32x128xf32>, vector<8x128xf32> -> vector<8x128xf32>
    %32 = vector.broadcast %5 : vector<1x128xf32> to vector<8x128xf32>
    %33 = arith.addf %31, %32 : vector<8x128xf32>
    %cst_15 = arith.constant dense<0.000000e+00> : vector<8x128xf32>
    %34 = tpu.matmul %30, %2, %cst_15 {dimension_numbers = #tpu.dot_dimension_numbers<[1], [0], [0], [1], [0, 0, 1, 1], [], []>} : vector<8x32xf32>, vector<32x128xf32>, vector<8x128xf32> -> vector<8x128xf32>
    %35 = arith.addf %11, %34 : vector<8x128xf32>
    %36 = vector.extract_strided_slice %35 {offsets = [0, 0], sizes = [8, 96], strides = [1, 1]} : vector<8x128xf32> to vector<8x96xf32>
    %37 = arith.negf %36 : vector<8x96xf32>
    %38 = math.exp %37 : vector<8x96xf32>
    %cst_16 = arith.constant 1.000000e+00 : f32
    %39 = vector.broadcast %cst_16 : f32 to vector<8x96xf32>
    %40 = arith.addf %39, %38 : vector<8x96xf32>
    %41 = arith.divf %39, %40 : vector<8x96xf32>
    %42 = vector.extract_strided_slice %35 {offsets = [0, 96], sizes = [8, 32], strides = [1, 1]} : vector<8x128xf32> to vector<8x32xf32>
    %43 = math.tanh %42 : vector<8x32xf32>
    %44 = vector.extract_strided_slice %41 {offsets = [0, 0], sizes = [8, 32], strides = [1, 1]} : vector<8x96xf32> to vector<8x32xf32>
    %45 = vector.extract_strided_slice %41 {offsets = [0, 32], sizes = [8, 32], strides = [1, 1]} : vector<8x96xf32> to vector<8x32xf32>
    %46 = vector.extract_strided_slice %41 {offsets = [0, 64], sizes = [8, 32], strides = [1, 1]} : vector<8x96xf32> to vector<8x32xf32>
    %47 = arith.mulf %45, %28 : vector<8x32xf32>
    %48 = arith.mulf %44, %43 : vector<8x32xf32>
    %49 = arith.addf %47, %48 : vector<8x32xf32>
    %50 = math.tanh %49 : vector<8x32xf32>
    %51 = arith.mulf %46, %50 : vector<8x32xf32>
    %cst_17 = arith.constant dense<0.000000e+00> : vector<8x128xf32>
    %52 = tpu.matmul %51, %1, %cst_17 {dimension_numbers = #tpu.dot_dimension_numbers<[1], [0], [0], [1], [0, 0, 1, 1], [], []>} : vector<8x32xf32>, vector<32x128xf32>, vector<8x128xf32> -> vector<8x128xf32>
    %53 = vector.broadcast %5 : vector<1x128xf32> to vector<8x128xf32>
    %54 = arith.addf %52, %53 : vector<8x128xf32>
    %55 = vector.extract_strided_slice %33 {offsets = [0, 0], sizes = [8, 96], strides = [1, 1]} : vector<8x128xf32> to vector<8x96xf32>
    %56 = arith.negf %55 : vector<8x96xf32>
    %57 = math.exp %56 : vector<8x96xf32>
    %cst_18 = arith.constant 1.000000e+00 : f32
    %58 = vector.broadcast %cst_18 : f32 to vector<8x96xf32>
    %59 = arith.addf %58, %57 : vector<8x96xf32>
    %60 = arith.divf %58, %59 : vector<8x96xf32>
    %61 = vector.extract_strided_slice %33 {offsets = [0, 96], sizes = [8, 32], strides = [1, 1]} : vector<8x128xf32> to vector<8x32xf32>
    %62 = math.tanh %61 : vector<8x32xf32>
    %63 = vector.extract_strided_slice %60 {offsets = [0, 0], sizes = [8, 32], strides = [1, 1]} : vector<8x96xf32> to vector<8x32xf32>
    %64 = vector.extract_strided_slice %60 {offsets = [0, 64], sizes = [8, 32], strides = [1, 1]} : vector<8x96xf32> to vector<8x32xf32>
    %65 = arith.mulf %63, %62 : vector<8x32xf32>
    %66 = math.tanh %65 : vector<8x32xf32>
    %67 = arith.mulf %64, %66 : vector<8x32xf32>
    %cst_19 = arith.constant dense<0.000000e+00> : vector<8x128xf32>
    %68 = tpu.matmul %51, %2, %cst_19 {dimension_numbers = #tpu.dot_dimension_numbers<[1], [0], [0], [1], [0, 0, 1, 1], [], []>} : vector<8x32xf32>, vector<32x128xf32>, vector<8x128xf32> -> vector<8x128xf32>
    %69 = arith.addf %12, %68 : vector<8x128xf32>
    %70 = vector.extract_strided_slice %69 {offsets = [0, 0], sizes = [8, 96], strides = [1, 1]} : vector<8x128xf32> to vector<8x96xf32>
    %71 = arith.negf %70 : vector<8x96xf32>
    %72 = math.exp %71 : vector<8x96xf32>
    %cst_20 = arith.constant 1.000000e+00 : f32
    %73 = vector.broadcast %cst_20 : f32 to vector<8x96xf32>
    %74 = arith.addf %73, %72 : vector<8x96xf32>
    %75 = arith.divf %73, %74 : vector<8x96xf32>
    %76 = vector.extract_strided_slice %69 {offsets = [0, 96], sizes = [8, 32], strides = [1, 1]} : vector<8x128xf32> to vector<8x32xf32>
    %77 = math.tanh %76 : vector<8x32xf32>
    %78 = vector.extract_strided_slice %75 {offsets = [0, 0], sizes = [8, 32], strides = [1, 1]} : vector<8x96xf32> to vector<8x32xf32>
    %79 = vector.extract_strided_slice %75 {offsets = [0, 32], sizes = [8, 32], strides = [1, 1]} : vector<8x96xf32> to vector<8x32xf32>
    %80 = vector.extract_strided_slice %75 {offsets = [0, 64], sizes = [8, 32], strides = [1, 1]} : vector<8x96xf32> to vector<8x32xf32>
    %81 = arith.mulf %79, %49 : vector<8x32xf32>
    %82 = arith.mulf %78, %77 : vector<8x32xf32>
    %83 = arith.addf %81, %82 : vector<8x32xf32>
    %84 = math.tanh %83 : vector<8x32xf32>
    %85 = arith.mulf %80, %84 : vector<8x32xf32>
    %cst_21 = arith.constant dense<0.000000e+00> : vector<8x128xf32>
    %86 = tpu.matmul %85, %1, %cst_21 {dimension_numbers = #tpu.dot_dimension_numbers<[1], [0], [0], [1], [0, 0, 1, 1], [], []>} : vector<8x32xf32>, vector<32x128xf32>, vector<8x128xf32> -> vector<8x128xf32>
    %87 = vector.broadcast %5 : vector<1x128xf32> to vector<8x128xf32>
    %88 = arith.addf %86, %87 : vector<8x128xf32>
    %cst_22 = arith.constant dense<0.000000e+00> : vector<8x128xf32>
    %89 = tpu.matmul %67, %3, %cst_22 {dimension_numbers = #tpu.dot_dimension_numbers<[1], [0], [0], [1], [0, 0, 1, 1], [], []>} : vector<8x32xf32>, vector<32x128xf32>, vector<8x128xf32> -> vector<8x128xf32>
    %90 = arith.addf %54, %89 : vector<8x128xf32>
    %91 = vector.extract_strided_slice %90 {offsets = [0, 0], sizes = [8, 96], strides = [1, 1]} : vector<8x128xf32> to vector<8x96xf32>
    %92 = arith.negf %91 : vector<8x96xf32>
    %93 = math.exp %92 : vector<8x96xf32>
    %cst_23 = arith.constant 1.000000e+00 : f32
    %94 = vector.broadcast %cst_23 : f32 to vector<8x96xf32>
    %95 = arith.addf %94, %93 : vector<8x96xf32>
    %96 = arith.divf %94, %95 : vector<8x96xf32>
    %97 = vector.extract_strided_slice %90 {offsets = [0, 96], sizes = [8, 32], strides = [1, 1]} : vector<8x128xf32> to vector<8x32xf32>
    %98 = math.tanh %97 : vector<8x32xf32>
    %99 = vector.extract_strided_slice %96 {offsets = [0, 0], sizes = [8, 32], strides = [1, 1]} : vector<8x96xf32> to vector<8x32xf32>
    %100 = vector.extract_strided_slice %96 {offsets = [0, 32], sizes = [8, 32], strides = [1, 1]} : vector<8x96xf32> to vector<8x32xf32>
    %101 = vector.extract_strided_slice %96 {offsets = [0, 64], sizes = [8, 32], strides = [1, 1]} : vector<8x96xf32> to vector<8x32xf32>
    %102 = arith.mulf %100, %65 : vector<8x32xf32>
    %103 = arith.mulf %99, %98 : vector<8x32xf32>
    %104 = arith.addf %102, %103 : vector<8x32xf32>
    %105 = math.tanh %104 : vector<8x32xf32>
    %106 = arith.mulf %101, %105 : vector<8x32xf32>
    %cst_24 = arith.constant dense<0.000000e+00> : vector<8x128xf32>
    %107 = tpu.matmul %85, %2, %cst_24 {dimension_numbers = #tpu.dot_dimension_numbers<[1], [0], [0], [1], [0, 0, 1, 1], [], []>} : vector<8x32xf32>, vector<32x128xf32>, vector<8x128xf32> -> vector<8x128xf32>
    %108 = arith.addf %13, %107 : vector<8x128xf32>
    %109 = vector.extract_strided_slice %108 {offsets = [0, 0], sizes = [8, 96], strides = [1, 1]} : vector<8x128xf32> to vector<8x96xf32>
    %110 = arith.negf %109 : vector<8x96xf32>
    %111 = math.exp %110 : vector<8x96xf32>
    %cst_25 = arith.constant 1.000000e+00 : f32
    %112 = vector.broadcast %cst_25 : f32 to vector<8x96xf32>
    %113 = arith.addf %112, %111 : vector<8x96xf32>
    %114 = arith.divf %112, %113 : vector<8x96xf32>
    %115 = vector.extract_strided_slice %108 {offsets = [0, 96], sizes = [8, 32], strides = [1, 1]} : vector<8x128xf32> to vector<8x32xf32>
    %116 = math.tanh %115 : vector<8x32xf32>
    %117 = vector.extract_strided_slice %114 {offsets = [0, 0], sizes = [8, 32], strides = [1, 1]} : vector<8x96xf32> to vector<8x32xf32>
    %118 = vector.extract_strided_slice %114 {offsets = [0, 32], sizes = [8, 32], strides = [1, 1]} : vector<8x96xf32> to vector<8x32xf32>
    %119 = vector.extract_strided_slice %114 {offsets = [0, 64], sizes = [8, 32], strides = [1, 1]} : vector<8x96xf32> to vector<8x32xf32>
    %120 = arith.mulf %118, %83 : vector<8x32xf32>
    %121 = arith.mulf %117, %116 : vector<8x32xf32>
    %122 = arith.addf %120, %121 : vector<8x32xf32>
    %123 = math.tanh %122 : vector<8x32xf32>
    %124 = arith.mulf %119, %123 : vector<8x32xf32>
    %cst_26 = arith.constant dense<0.000000e+00> : vector<8x128xf32>
    %125 = tpu.matmul %124, %1, %cst_26 {dimension_numbers = #tpu.dot_dimension_numbers<[1], [0], [0], [1], [0, 0, 1, 1], [], []>} : vector<8x32xf32>, vector<32x128xf32>, vector<8x128xf32> -> vector<8x128xf32>
    %126 = vector.broadcast %5 : vector<1x128xf32> to vector<8x128xf32>
    %127 = arith.addf %125, %126 : vector<8x128xf32>
    %cst_27 = arith.constant dense<0.000000e+00> : vector<8x128xf32>
    %128 = tpu.matmul %106, %3, %cst_27 {dimension_numbers = #tpu.dot_dimension_numbers<[1], [0], [0], [1], [0, 0, 1, 1], [], []>} : vector<8x32xf32>, vector<32x128xf32>, vector<8x128xf32> -> vector<8x128xf32>
    %129 = arith.addf %88, %128 : vector<8x128xf32>
    %130 = vector.extract_strided_slice %129 {offsets = [0, 0], sizes = [8, 96], strides = [1, 1]} : vector<8x128xf32> to vector<8x96xf32>
    %131 = arith.negf %130 : vector<8x96xf32>
    %132 = math.exp %131 : vector<8x96xf32>
    %cst_28 = arith.constant 1.000000e+00 : f32
    %133 = vector.broadcast %cst_28 : f32 to vector<8x96xf32>
    %134 = arith.addf %133, %132 : vector<8x96xf32>
    %135 = arith.divf %133, %134 : vector<8x96xf32>
    %136 = vector.extract_strided_slice %129 {offsets = [0, 96], sizes = [8, 32], strides = [1, 1]} : vector<8x128xf32> to vector<8x32xf32>
    %137 = math.tanh %136 : vector<8x32xf32>
    %138 = vector.extract_strided_slice %135 {offsets = [0, 0], sizes = [8, 32], strides = [1, 1]} : vector<8x96xf32> to vector<8x32xf32>
    %139 = vector.extract_strided_slice %135 {offsets = [0, 32], sizes = [8, 32], strides = [1, 1]} : vector<8x96xf32> to vector<8x32xf32>
    %140 = vector.extract_strided_slice %135 {offsets = [0, 64], sizes = [8, 32], strides = [1, 1]} : vector<8x96xf32> to vector<8x32xf32>
    %141 = arith.mulf %139, %104 : vector<8x32xf32>
    %142 = arith.mulf %138, %137 : vector<8x32xf32>
    %143 = arith.addf %141, %142 : vector<8x32xf32>
    %144 = math.tanh %143 : vector<8x32xf32>
    %145 = arith.mulf %140, %144 : vector<8x32xf32>
    %cst_29 = arith.constant dense<0.000000e+00> : vector<8x128xf32>
    %146 = tpu.matmul %124, %2, %cst_29 {dimension_numbers = #tpu.dot_dimension_numbers<[1], [0], [0], [1], [0, 0, 1, 1], [], []>} : vector<8x32xf32>, vector<32x128xf32>, vector<8x128xf32> -> vector<8x128xf32>
    %147 = arith.addf %14, %146 : vector<8x128xf32>
    %148 = vector.extract_strided_slice %147 {offsets = [0, 0], sizes = [8, 96], strides = [1, 1]} : vector<8x128xf32> to vector<8x96xf32>
    %149 = arith.negf %148 : vector<8x96xf32>
    %150 = math.exp %149 : vector<8x96xf32>
    %cst_30 = arith.constant 1.000000e+00 : f32
    %151 = vector.broadcast %cst_30 : f32 to vector<8x96xf32>
    %152 = arith.addf %151, %150 : vector<8x96xf32>
    %153 = arith.divf %151, %152 : vector<8x96xf32>
    %154 = vector.extract_strided_slice %147 {offsets = [0, 96], sizes = [8, 32], strides = [1, 1]} : vector<8x128xf32> to vector<8x32xf32>
    %155 = math.tanh %154 : vector<8x32xf32>
    %156 = vector.extract_strided_slice %153 {offsets = [0, 0], sizes = [8, 32], strides = [1, 1]} : vector<8x96xf32> to vector<8x32xf32>
    %157 = vector.extract_strided_slice %153 {offsets = [0, 32], sizes = [8, 32], strides = [1, 1]} : vector<8x96xf32> to vector<8x32xf32>
    %158 = vector.extract_strided_slice %153 {offsets = [0, 64], sizes = [8, 32], strides = [1, 1]} : vector<8x96xf32> to vector<8x32xf32>
    %159 = arith.mulf %157, %122 : vector<8x32xf32>
    %160 = arith.mulf %156, %155 : vector<8x32xf32>
    %161 = arith.addf %159, %160 : vector<8x32xf32>
    %162 = math.tanh %161 : vector<8x32xf32>
    %163 = arith.mulf %158, %162 : vector<8x32xf32>
    %cst_31 = arith.constant dense<0.000000e+00> : vector<8x128xf32>
    %164 = tpu.matmul %163, %1, %cst_31 {dimension_numbers = #tpu.dot_dimension_numbers<[1], [0], [0], [1], [0, 0, 1, 1], [], []>} : vector<8x32xf32>, vector<32x128xf32>, vector<8x128xf32> -> vector<8x128xf32>
    %165 = vector.broadcast %5 : vector<1x128xf32> to vector<8x128xf32>
    %166 = arith.addf %164, %165 : vector<8x128xf32>
    %cst_32 = arith.constant dense<0.000000e+00> : vector<8x128xf32>
    %167 = tpu.matmul %145, %3, %cst_32 {dimension_numbers = #tpu.dot_dimension_numbers<[1], [0], [0], [1], [0, 0, 1, 1], [], []>} : vector<8x32xf32>, vector<32x128xf32>, vector<8x128xf32> -> vector<8x128xf32>
    %168 = arith.addf %127, %167 : vector<8x128xf32>
    %169 = vector.extract_strided_slice %168 {offsets = [0, 0], sizes = [8, 96], strides = [1, 1]} : vector<8x128xf32> to vector<8x96xf32>
    %170 = arith.negf %169 : vector<8x96xf32>
    %171 = math.exp %170 : vector<8x96xf32>
    %cst_33 = arith.constant 1.000000e+00 : f32
    %172 = vector.broadcast %cst_33 : f32 to vector<8x96xf32>
    %173 = arith.addf %172, %171 : vector<8x96xf32>
    %174 = arith.divf %172, %173 : vector<8x96xf32>
    %175 = vector.extract_strided_slice %168 {offsets = [0, 96], sizes = [8, 32], strides = [1, 1]} : vector<8x128xf32> to vector<8x32xf32>
    %176 = math.tanh %175 : vector<8x32xf32>
    %177 = vector.extract_strided_slice %174 {offsets = [0, 0], sizes = [8, 32], strides = [1, 1]} : vector<8x96xf32> to vector<8x32xf32>
    %178 = vector.extract_strided_slice %174 {offsets = [0, 32], sizes = [8, 32], strides = [1, 1]} : vector<8x96xf32> to vector<8x32xf32>
    %179 = vector.extract_strided_slice %174 {offsets = [0, 64], sizes = [8, 32], strides = [1, 1]} : vector<8x96xf32> to vector<8x32xf32>
    %180 = arith.mulf %178, %143 : vector<8x32xf32>
    %181 = arith.mulf %177, %176 : vector<8x32xf32>
    %182 = arith.addf %180, %181 : vector<8x32xf32>
    %183 = math.tanh %182 : vector<8x32xf32>
    %184 = arith.mulf %179, %183 : vector<8x32xf32>
    %cst_34 = arith.constant dense<0.000000e+00> : vector<8x128xf32>
    %185 = tpu.matmul %163, %2, %cst_34 {dimension_numbers = #tpu.dot_dimension_numbers<[1], [0], [0], [1], [0, 0, 1, 1], [], []>} : vector<8x32xf32>, vector<32x128xf32>, vector<8x128xf32> -> vector<8x128xf32>
    %186 = arith.addf %15, %185 : vector<8x128xf32>
    %187 = vector.extract_strided_slice %186 {offsets = [0, 0], sizes = [8, 96], strides = [1, 1]} : vector<8x128xf32> to vector<8x96xf32>
    %188 = arith.negf %187 : vector<8x96xf32>
    %189 = math.exp %188 : vector<8x96xf32>
    %cst_35 = arith.constant 1.000000e+00 : f32
    %190 = vector.broadcast %cst_35 : f32 to vector<8x96xf32>
    %191 = arith.addf %190, %189 : vector<8x96xf32>
    %192 = arith.divf %190, %191 : vector<8x96xf32>
    %193 = vector.extract_strided_slice %186 {offsets = [0, 96], sizes = [8, 32], strides = [1, 1]} : vector<8x128xf32> to vector<8x32xf32>
    %194 = math.tanh %193 : vector<8x32xf32>
    %195 = vector.extract_strided_slice %192 {offsets = [0, 0], sizes = [8, 32], strides = [1, 1]} : vector<8x96xf32> to vector<8x32xf32>
    %196 = vector.extract_strided_slice %192 {offsets = [0, 32], sizes = [8, 32], strides = [1, 1]} : vector<8x96xf32> to vector<8x32xf32>
    %197 = vector.extract_strided_slice %192 {offsets = [0, 64], sizes = [8, 32], strides = [1, 1]} : vector<8x96xf32> to vector<8x32xf32>
    %198 = arith.mulf %196, %161 : vector<8x32xf32>
    %199 = arith.mulf %195, %194 : vector<8x32xf32>
    %200 = arith.addf %198, %199 : vector<8x32xf32>
    %201 = math.tanh %200 : vector<8x32xf32>
    %202 = arith.mulf %197, %201 : vector<8x32xf32>
    %cst_36 = arith.constant dense<0.000000e+00> : vector<8x128xf32>
    %203 = tpu.matmul %202, %1, %cst_36 {dimension_numbers = #tpu.dot_dimension_numbers<[1], [0], [0], [1], [0, 0, 1, 1], [], []>} : vector<8x32xf32>, vector<32x128xf32>, vector<8x128xf32> -> vector<8x128xf32>
    %204 = vector.broadcast %5 : vector<1x128xf32> to vector<8x128xf32>
    %205 = arith.addf %203, %204 : vector<8x128xf32>
    %cst_37 = arith.constant dense<0.000000e+00> : vector<8x128xf32>
    %206 = tpu.matmul %184, %3, %cst_37 {dimension_numbers = #tpu.dot_dimension_numbers<[1], [0], [0], [1], [0, 0, 1, 1], [], []>} : vector<8x32xf32>, vector<32x128xf32>, vector<8x128xf32> -> vector<8x128xf32>
    %207 = arith.addf %166, %206 : vector<8x128xf32>
    %208 = vector.extract_strided_slice %207 {offsets = [0, 0], sizes = [8, 96], strides = [1, 1]} : vector<8x128xf32> to vector<8x96xf32>
    %209 = arith.negf %208 : vector<8x96xf32>
    %210 = math.exp %209 : vector<8x96xf32>
    %cst_38 = arith.constant 1.000000e+00 : f32
    %211 = vector.broadcast %cst_38 : f32 to vector<8x96xf32>
    %212 = arith.addf %211, %210 : vector<8x96xf32>
    %213 = arith.divf %211, %212 : vector<8x96xf32>
    %214 = vector.extract_strided_slice %207 {offsets = [0, 96], sizes = [8, 32], strides = [1, 1]} : vector<8x128xf32> to vector<8x32xf32>
    %215 = math.tanh %214 : vector<8x32xf32>
    %216 = vector.extract_strided_slice %213 {offsets = [0, 0], sizes = [8, 32], strides = [1, 1]} : vector<8x96xf32> to vector<8x32xf32>
    %217 = vector.extract_strided_slice %213 {offsets = [0, 32], sizes = [8, 32], strides = [1, 1]} : vector<8x96xf32> to vector<8x32xf32>
    %218 = vector.extract_strided_slice %213 {offsets = [0, 64], sizes = [8, 32], strides = [1, 1]} : vector<8x96xf32> to vector<8x32xf32>
    %219 = arith.mulf %217, %182 : vector<8x32xf32>
    %220 = arith.mulf %216, %215 : vector<8x32xf32>
    %221 = arith.addf %219, %220 : vector<8x32xf32>
    %222 = math.tanh %221 : vector<8x32xf32>
    %223 = arith.mulf %218, %222 : vector<8x32xf32>
    %cst_39 = arith.constant dense<0.000000e+00> : vector<8x128xf32>
    %224 = tpu.matmul %202, %2, %cst_39 {dimension_numbers = #tpu.dot_dimension_numbers<[1], [0], [0], [1], [0, 0, 1, 1], [], []>} : vector<8x32xf32>, vector<32x128xf32>, vector<8x128xf32> -> vector<8x128xf32>
    %225 = arith.addf %16, %224 : vector<8x128xf32>
    %226 = vector.extract_strided_slice %225 {offsets = [0, 0], sizes = [8, 96], strides = [1, 1]} : vector<8x128xf32> to vector<8x96xf32>
    %227 = arith.negf %226 : vector<8x96xf32>
    %228 = math.exp %227 : vector<8x96xf32>
    %cst_40 = arith.constant 1.000000e+00 : f32
    %229 = vector.broadcast %cst_40 : f32 to vector<8x96xf32>
    %230 = arith.addf %229, %228 : vector<8x96xf32>
    %231 = arith.divf %229, %230 : vector<8x96xf32>
    %232 = vector.extract_strided_slice %225 {offsets = [0, 96], sizes = [8, 32], strides = [1, 1]} : vector<8x128xf32> to vector<8x32xf32>
    %233 = math.tanh %232 : vector<8x32xf32>
    %234 = vector.extract_strided_slice %231 {offsets = [0, 0], sizes = [8, 32], strides = [1, 1]} : vector<8x96xf32> to vector<8x32xf32>
    %235 = vector.extract_strided_slice %231 {offsets = [0, 32], sizes = [8, 32], strides = [1, 1]} : vector<8x96xf32> to vector<8x32xf32>
    %236 = vector.extract_strided_slice %231 {offsets = [0, 64], sizes = [8, 32], strides = [1, 1]} : vector<8x96xf32> to vector<8x32xf32>
    %237 = arith.mulf %235, %200 : vector<8x32xf32>
    %238 = arith.mulf %234, %233 : vector<8x32xf32>
    %239 = arith.addf %237, %238 : vector<8x32xf32>
    %240 = math.tanh %239 : vector<8x32xf32>
    %241 = arith.mulf %236, %240 : vector<8x32xf32>
    %cst_41 = arith.constant dense<0.000000e+00> : vector<8x128xf32>
    %242 = tpu.matmul %241, %1, %cst_41 {dimension_numbers = #tpu.dot_dimension_numbers<[1], [0], [0], [1], [0, 0, 1, 1], [], []>} : vector<8x32xf32>, vector<32x128xf32>, vector<8x128xf32> -> vector<8x128xf32>
    %243 = vector.broadcast %5 : vector<1x128xf32> to vector<8x128xf32>
    %244 = arith.addf %242, %243 : vector<8x128xf32>
    %cst_42 = arith.constant dense<0.000000e+00> : vector<8x128xf32>
    %245 = tpu.matmul %223, %3, %cst_42 {dimension_numbers = #tpu.dot_dimension_numbers<[1], [0], [0], [1], [0, 0, 1, 1], [], []>} : vector<8x32xf32>, vector<32x128xf32>, vector<8x128xf32> -> vector<8x128xf32>
    %246 = arith.addf %205, %245 : vector<8x128xf32>
    %247 = vector.extract_strided_slice %246 {offsets = [0, 0], sizes = [8, 96], strides = [1, 1]} : vector<8x128xf32> to vector<8x96xf32>
    %248 = arith.negf %247 : vector<8x96xf32>
    %249 = math.exp %248 : vector<8x96xf32>
    %cst_43 = arith.constant 1.000000e+00 : f32
    %250 = vector.broadcast %cst_43 : f32 to vector<8x96xf32>
    %251 = arith.addf %250, %249 : vector<8x96xf32>
    %252 = arith.divf %250, %251 : vector<8x96xf32>
    %253 = vector.extract_strided_slice %246 {offsets = [0, 96], sizes = [8, 32], strides = [1, 1]} : vector<8x128xf32> to vector<8x32xf32>
    %254 = math.tanh %253 : vector<8x32xf32>
    %255 = vector.extract_strided_slice %252 {offsets = [0, 0], sizes = [8, 32], strides = [1, 1]} : vector<8x96xf32> to vector<8x32xf32>
    %256 = vector.extract_strided_slice %252 {offsets = [0, 32], sizes = [8, 32], strides = [1, 1]} : vector<8x96xf32> to vector<8x32xf32>
    %257 = vector.extract_strided_slice %252 {offsets = [0, 64], sizes = [8, 32], strides = [1, 1]} : vector<8x96xf32> to vector<8x32xf32>
    %258 = arith.mulf %256, %221 : vector<8x32xf32>
    %259 = arith.mulf %255, %254 : vector<8x32xf32>
    %260 = arith.addf %258, %259 : vector<8x32xf32>
    %261 = math.tanh %260 : vector<8x32xf32>
    %262 = arith.mulf %257, %261 : vector<8x32xf32>
    %cst_44 = arith.constant dense<0.000000e+00> : vector<8x128xf32>
    %263 = tpu.matmul %241, %2, %cst_44 {dimension_numbers = #tpu.dot_dimension_numbers<[1], [0], [0], [1], [0, 0, 1, 1], [], []>} : vector<8x32xf32>, vector<32x128xf32>, vector<8x128xf32> -> vector<8x128xf32>
    %264 = arith.addf %17, %263 : vector<8x128xf32>
    %265 = vector.extract_strided_slice %264 {offsets = [0, 0], sizes = [8, 96], strides = [1, 1]} : vector<8x128xf32> to vector<8x96xf32>
    %266 = arith.negf %265 : vector<8x96xf32>
    %267 = math.exp %266 : vector<8x96xf32>
    %cst_45 = arith.constant 1.000000e+00 : f32
    %268 = vector.broadcast %cst_45 : f32 to vector<8x96xf32>
    %269 = arith.addf %268, %267 : vector<8x96xf32>
    %270 = arith.divf %268, %269 : vector<8x96xf32>
    %271 = vector.extract_strided_slice %264 {offsets = [0, 96], sizes = [8, 32], strides = [1, 1]} : vector<8x128xf32> to vector<8x32xf32>
    %272 = math.tanh %271 : vector<8x32xf32>
    %273 = vector.extract_strided_slice %270 {offsets = [0, 0], sizes = [8, 32], strides = [1, 1]} : vector<8x96xf32> to vector<8x32xf32>
    %274 = vector.extract_strided_slice %270 {offsets = [0, 32], sizes = [8, 32], strides = [1, 1]} : vector<8x96xf32> to vector<8x32xf32>
    %275 = vector.extract_strided_slice %270 {offsets = [0, 64], sizes = [8, 32], strides = [1, 1]} : vector<8x96xf32> to vector<8x32xf32>
    %276 = arith.mulf %274, %239 : vector<8x32xf32>
    %277 = arith.mulf %273, %272 : vector<8x32xf32>
    %278 = arith.addf %276, %277 : vector<8x32xf32>
    %279 = math.tanh %278 : vector<8x32xf32>
    %280 = arith.mulf %275, %279 : vector<8x32xf32>
    %cst_46 = arith.constant dense<0.000000e+00> : vector<8x128xf32>
    %281 = tpu.matmul %280, %1, %cst_46 {dimension_numbers = #tpu.dot_dimension_numbers<[1], [0], [0], [1], [0, 0, 1, 1], [], []>} : vector<8x32xf32>, vector<32x128xf32>, vector<8x128xf32> -> vector<8x128xf32>
    %282 = vector.broadcast %5 : vector<1x128xf32> to vector<8x128xf32>
    %283 = arith.addf %281, %282 : vector<8x128xf32>
    %cst_47 = arith.constant dense<0.000000e+00> : vector<8x128xf32>
    %284 = tpu.matmul %262, %3, %cst_47 {dimension_numbers = #tpu.dot_dimension_numbers<[1], [0], [0], [1], [0, 0, 1, 1], [], []>} : vector<8x32xf32>, vector<32x128xf32>, vector<8x128xf32> -> vector<8x128xf32>
    %285 = arith.addf %244, %284 : vector<8x128xf32>
    %286 = vector.extract_strided_slice %285 {offsets = [0, 0], sizes = [8, 96], strides = [1, 1]} : vector<8x128xf32> to vector<8x96xf32>
    %287 = arith.negf %286 : vector<8x96xf32>
    %288 = math.exp %287 : vector<8x96xf32>
    %cst_48 = arith.constant 1.000000e+00 : f32
    %289 = vector.broadcast %cst_48 : f32 to vector<8x96xf32>
    %290 = arith.addf %289, %288 : vector<8x96xf32>
    %291 = arith.divf %289, %290 : vector<8x96xf32>
    %292 = vector.extract_strided_slice %285 {offsets = [0, 96], sizes = [8, 32], strides = [1, 1]} : vector<8x128xf32> to vector<8x32xf32>
    %293 = math.tanh %292 : vector<8x32xf32>
    %294 = vector.extract_strided_slice %291 {offsets = [0, 0], sizes = [8, 32], strides = [1, 1]} : vector<8x96xf32> to vector<8x32xf32>
    %295 = vector.extract_strided_slice %291 {offsets = [0, 32], sizes = [8, 32], strides = [1, 1]} : vector<8x96xf32> to vector<8x32xf32>
    %296 = vector.extract_strided_slice %291 {offsets = [0, 64], sizes = [8, 32], strides = [1, 1]} : vector<8x96xf32> to vector<8x32xf32>
    %297 = arith.mulf %295, %260 : vector<8x32xf32>
    %298 = arith.mulf %294, %293 : vector<8x32xf32>
    %299 = arith.addf %297, %298 : vector<8x32xf32>
    %300 = math.tanh %299 : vector<8x32xf32>
    %301 = arith.mulf %296, %300 : vector<8x32xf32>
    %cst_49 = arith.constant dense<0.000000e+00> : vector<8x128xf32>
    %302 = tpu.matmul %301, %3, %cst_49 {dimension_numbers = #tpu.dot_dimension_numbers<[1], [0], [0], [1], [0, 0, 1, 1], [], []>} : vector<8x32xf32>, vector<32x128xf32>, vector<8x128xf32> -> vector<8x128xf32>
    %303 = arith.addf %283, %302 : vector<8x128xf32>
    %304 = vector.extract_strided_slice %303 {offsets = [0, 0], sizes = [8, 96], strides = [1, 1]} : vector<8x128xf32> to vector<8x96xf32>
    %305 = arith.negf %304 : vector<8x96xf32>
    %306 = math.exp %305 : vector<8x96xf32>
    %cst_50 = arith.constant 1.000000e+00 : f32
    %307 = vector.broadcast %cst_50 : f32 to vector<8x96xf32>
    %308 = arith.addf %307, %306 : vector<8x96xf32>
    %309 = arith.divf %307, %308 : vector<8x96xf32>
    %310 = vector.extract_strided_slice %303 {offsets = [0, 96], sizes = [8, 32], strides = [1, 1]} : vector<8x128xf32> to vector<8x32xf32>
    %311 = math.tanh %310 : vector<8x32xf32>
    %312 = vector.extract_strided_slice %309 {offsets = [0, 0], sizes = [8, 32], strides = [1, 1]} : vector<8x96xf32> to vector<8x32xf32>
    %313 = vector.extract_strided_slice %309 {offsets = [0, 32], sizes = [8, 32], strides = [1, 1]} : vector<8x96xf32> to vector<8x32xf32>
    %314 = vector.extract_strided_slice %309 {offsets = [0, 64], sizes = [8, 32], strides = [1, 1]} : vector<8x96xf32> to vector<8x32xf32>
    %315 = arith.mulf %313, %299 : vector<8x32xf32>
    %316 = arith.mulf %312, %311 : vector<8x32xf32>
    %317 = arith.addf %315, %316 : vector<8x32xf32>
    %318 = math.tanh %317 : vector<8x32xf32>
    %319 = arith.mulf %314, %318 : vector<8x32xf32>
    %c0_51 = arith.constant 0 : index
    %c0_52 = arith.constant 0 : index
    %320 = vector.load %arg7[%c0_51, %c0_52] : memref<32x8xf32, #tpu.memory_space<vmem>>, vector<32x8xf32>
    %cst_53 = arith.constant dense<0.000000e+00> : vector<8x8xf32>
    %321 = tpu.matmul %319, %320, %cst_53 {dimension_numbers = #tpu.dot_dimension_numbers<[1], [0], [0], [1], [0, 0, 1, 1], [], []>} : vector<8x32xf32>, vector<32x8xf32>, vector<8x8xf32> -> vector<8x8xf32>
    %c0_54 = arith.constant 0 : index
    %c0_55 = arith.constant 0 : index
    %322 = vector.load %arg8[%c0_54, %c0_55] : memref<1x8xf32, #tpu.memory_space<vmem>>, vector<1x8xf32>
    %323 = vector.broadcast %322 : vector<1x8xf32> to vector<8x8xf32>
    %324 = arith.addf %321, %323 : vector<8x8xf32>
    %c0_56 = arith.constant 0 : index
    %c0_57 = arith.constant 0 : index
    %325 = vector.load %arg9[%c0_56, %c0_57] : memref<8x8xf32, #tpu.memory_space<vmem>>, vector<8x8xf32>
    tpu.vector_store %arg9[%c0_56, %c0_57], %324 {strides = array<i32>} : memref<8x8xf32, #tpu.memory_space<vmem>>, vector<8x8xf32>,
    return
  }
}

</mosaic_0001>

<llo_original>
// kernel: tpu_custom_call.1
$region0: #{tpu_custom_call.1}
  #allocation0 [shape = 'u32[]', space=smem, size = 0x4, offset = 0x4, fixed_abs, tag = 'smem constant byte address 0x4 - core index']
  #allocation1 [shape = 'u32[72,128]{1,0:T(1,128)}', space=vmem, size = 0x9000, scoped, tag = 'internal scratch']
  %s0 = inlined_call_operand.vmem [shape: f32[64,16], index: 0, kind: input, shape index: {}]
  %s1 = inlined_call_operand.hbm [shape: f32[16,128], index: 1, kind: input, shape index: {}]
  %s2 = inlined_call_operand.vmem [shape: f32[32,128], index: 2, kind: input, shape index: {}]
  %s3 = inlined_call_operand.vmem [shape: f32[1,128], index: 3, kind: input, shape index: {}]
  %s4 = inlined_call_operand.vmem [shape: f32[32,128], index: 4, kind: input, shape index: {}]
  %s5 = inlined_call_operand.vmem [shape: f32[32,128], index: 5, kind: input, shape index: {}]
  %s6 = inlined_call_operand.vmem [shape: f32[1,128], index: 6, kind: input, shape index: {}]
  %s7 = inlined_call_operand.vmem [shape: f32[32,8], index: 7, kind: input, shape index: {}]
  %s8 = inlined_call_operand.vmem [shape: f32[1,8], index: 8, kind: input, shape index: {}]
  %s9 = inlined_call_operand.hbm [shape: f32[8,8], index: 9, kind: output, shape index: {}]
  %s10 = sld [smem:[#allocation0]]
  $region50: #{tpu_custom_call.1} parent=0
    _
  %s12 = ssub.s32 1, %s10
  %s13 = scalar_select 0, %s12, %s10
  $region1: #{tpu_custom_call.1} parent=0
    #allocation2 [shape = 'u8[8192]{0}', space=vmem, size = 0x2000, scoped, tag = 'input window, operand 1, single buffered']
    #allocation3 [shape = 's32[1]{0}', space=sflag, size = 0x4, scoped, tag = 'scoped memory for tpu_custom_call.1']
    #allocation4 [shape = 's32[1]{0}', space=sflag, size = 0x4, scoped, tag = 'scoped memory for tpu_custom_call.1']
    #allocation5 [shape = 'u8[4096]{0}', space=vmem, size = 0x1000, scoped, tag = 'output window, operand 0, single buffered']
    %14 = vsyncpa [#allocation3], 0
    %15 = vsyncpa [#allocation4], 0
    // Predicated region
    $region2: #{tpu_custom_call.1} parent=1 // pred_check
      _
    $region3: #{tpu_custom_call.1} parent=1 // pred_check_branch
      %17 = sbr.rel (0) target = $region5
    $region4: #{tpu_custom_call.1} parent=1 // pred_region
      _
    $region5: #{tpu_custom_call.1} parent=1 // pred_fallthru
      _
    // Predicated region
    $region6: #{tpu_custom_call.1} parent=1 // pred_check
      _
    $region7: #{tpu_custom_call.1} parent=1 // pred_check_branch
      %19 = sbr.rel (0) target = $region9
    $region8: #{tpu_custom_call.1} parent=1 // pred_region
      %21 = vsyncadd [#allocation3], 0
      %s22 = sshll.u32 %s1, 4
      %s23 = int_to_ptr.hbm [resolvable:$true] %s22
      %s24 = sshll.u32 [#allocation2], 4
      %s25 = int_to_ptr.vmem [resolvable:$true] %s24
      %30 = dma.hbm_to_vmem [thread:$0]  %s23, 256, %s25, [#allocation3], 128, 128, 8
    $region9: #{tpu_custom_call.1} parent=1 // pred_fallthru
      _
    // Predicated region
    $region10: #{tpu_custom_call.1} parent=1 // pred_check
      _
    $region11: #{tpu_custom_call.1} parent=1 // pred_check_branch
      %32 = sbr.rel (0) target = $region13
    $region12: #{tpu_custom_call.1} parent=1 // pred_region
      _
    $region13: #{tpu_custom_call.1} parent=1 // pred_fallthru
      _
    // Predicated region
    $region14: #{tpu_custom_call.1} parent=1 // pred_check
      _
    $region15: #{tpu_custom_call.1} parent=1 // pred_check_branch
      %34 = sbr.rel (0) target = $region17
    $region16: #{tpu_custom_call.1} parent=1 // pred_region
      _
    $region17: #{tpu_custom_call.1} parent=1 // pred_fallthru
      _
    // Predicated region
    $region18: #{tpu_custom_call.1} parent=1 // pred_check
      _
    $region19: #{tpu_custom_call.1} parent=1 // pred_check_branch
      %36 = sbr.rel (0) target = $region21
    $region20: #{tpu_custom_call.1} parent=1 // pred_region
      _
    $region21: #{tpu_custom_call.1} parent=1 // pred_fallthru
      _
    // Predicated region
    $region22: #{tpu_custom_call.1} parent=1 // pred_check
      _
    $region23: #{tpu_custom_call.1} parent=1 // pred_check_branch
      %38 = sbr.rel (0) target = $region25
    $region24: #{tpu_custom_call.1} parent=1 // pred_region
      _
    $region25: #{tpu_custom_call.1} parent=1 // pred_fallthru
      _
    // Predicated region
    $region26: #{tpu_custom_call.1} parent=1 // pred_check
      _
    $region27: #{tpu_custom_call.1} parent=1 // pred_check_branch
      %40 = sbr.rel (0) target = $region29
    $region28: #{tpu_custom_call.1} parent=1 // pred_region
      _
    $region29: #{tpu_custom_call.1} parent=1 // pred_fallthru
      _
    // Predicated region
    $region30: #{tpu_custom_call.1} parent=1 // pred_check
      _
    $region31: #{tpu_custom_call.1} parent=1 // pred_check_branch
      %42 = sbr.rel (0) target = $region33
    $region32: #{tpu_custom_call.1} parent=1 // pred_region
      _
    $region33: #{tpu_custom_call.1} parent=1 // pred_fallthru
      _
    // Predicated region
    $region34: #{tpu_custom_call.1} parent=1 // pred_check
      _
    $region35: #{tpu_custom_call.1} parent=1 // pred_check_branch
      %44 = sbr.rel (0) target = $region37
    $region36: #{tpu_custom_call.1} parent=1 // pred_region
      _
    $region37: #{tpu_custom_call.1} parent=1 // pred_fallthru
      _
    // Predicated region
    $region38: #{tpu_custom_call.1} parent=1 // pred_check
      _
    $region39: #{tpu_custom_call.1} parent=1 // pred_check_branch
      %46 = sbr.rel (0) target = $region41
    $region40: #{tpu_custom_call.1} parent=1 // pred_region
      %48 = dma.done [#allocation3], 256
    $region41: #{tpu_custom_call.1} parent=1 // pred_fallthru
      _
    %v49 = vld [vmem:[#allocation2] sm:$0xff]
    %v50 = vld [vmem:[#allocation2 + $0x8] sm:$0xff]
    %v51 = vld [vmem:[%s4] sm:$0xff]
    %v52 = vld [vmem:[%s4 + $0x8] sm:$0xff]
    %v53 = vld [vmem:[%s4 + $0x10] sm:$0xff]
    %v54 = vld [vmem:[%s4 + $0x18] sm:$0xff]
    %v55 = vld [vmem:[%s2] sm:$0xff]
    %v56 = vld [vmem:[%s2 + $0x8] sm:$0xff]
    %v57 = vld [vmem:[%s2 + $0x10] sm:$0xff]
    %v58 = vld [vmem:[%s2 + $0x18] sm:$0xff]
    %v59 = vld [vmem:[%s5] sm:$0xff]
    %v60 = vld [vmem:[%s5 + $0x8] sm:$0xff]
    %v61 = vld [vmem:[%s5 + $0x10] sm:$0xff]
    %v62 = vld [vmem:[%s5 + $0x18] sm:$0xff]
    %v63 = vld [vmem:[%s3] sm:$0x1]
    %v64 = vld [vmem:[%s6] sm:$0x1]
    %v65 = vld [vmem:[%s0] sm:$0xff]
    %v66 = vld [vmem:[%s0 + $0x8] sm:$0xff]
    %v67 = vld [vmem:[%s0 + $0x10] sm:$0xff]
    %v68 = vld [vmem:[%s0 + $0x18] sm:$0xff]
    %v69 = vld [vmem:[%s0 + $0x20] sm:$0xff]
    %v70 = vld [vmem:[%s0 + $0x28] sm:$0xff]
    %v71 = vld [vmem:[%s0 + $0x30] sm:$0xff]
    %v72 = vld [vmem:[%s0 + $0x38] sm:$0xff]
    %v74 = vperm.slane %v63, 0
    %vm76 = vcmask 130048
    %v78 = vsel %vm76, %v65, 0
    %v81 = vsel %vm76, %v66, 0
    %v84 = vsel %vm76, %v67, 0
    %v87 = vsel %vm76, %v68, 0
    %v90 = vsel %vm76, %v69, 0
    %v93 = vsel %vm76, %v70, 0
    %v96 = vsel %vm76, %v71, 0
    %v99 = vsel %vm76, %v72, 0
    %101 = vmatpush.msra.mxu0 0.0
    %102 = vmatpush.msra.mxu0 0.0
    %103 = vmatpush.msra.mxu0 0.0
    %104 = vmatpush.msra.mxu0 0.0
    %105 = vmatpush.msra.mxu0 0.0
    %106 = vmatpush.msra.mxu0 0.0
    %107 = vmatpush.msra.mxu0 0.0
    %108 = vmatpush.msra.mxu0 0.0
    %109 = vmatpush.msra.mxu0 0.0
    %110 = vmatpush.msra.mxu0 0.0
    %111 = vmatpush.msra.mxu0 0.0
    %112 = vmatpush.msra.mxu0 0.0
    %113 = vmatpush.msra.mxu0 0.0
    %114 = vmatpush.msra.mxu0 0.0
    %115 = vmatpush.msra.mxu0 %v50
    %116 = vmatpush.msra.mxu0 %v49
    %117 = vmatmul.f32.gmra.mxu0 %v78
    %v118 = vpop.f32.mrf.mxu0
    %v119 = vadd.f32 %v74, %v118
    %120 = vmatmul.f32.gmra.mxu0 %v81
    %v121 = vpop.f32.mrf.mxu0
    %v122 = vadd.f32 %v74, %v121
    %123 = vmatmul.f32.gmra.mxu0 %v84
    %v124 = vpop.f32.mrf.mxu0
    %v125 = vadd.f32 %v74, %v124
    %126 = vmatmul.f32.gmra.mxu0 %v87
    %v127 = vpop.f32.mrf.mxu0
    %v128 = vadd.f32 %v74, %v127
    %129 = vmatmul.f32.gmra.mxu0 %v90
    %v130 = vpop.f32.mrf.mxu0
    %v131 = vadd.f32 %v74, %v130
    %132 = vmatmul.f32.gmra.mxu0 %v93
    %v133 = vpop.f32.mrf.mxu0
    %v134 = vadd.f32 %v74, %v133
    %135 = vmatmul.f32.gmra.mxu0 %v96
    %v136 = vpop.f32.mrf.mxu0
    %v137 = vadd.f32 %v74, %v136
    %138 = vmatmul.f32.gmra.mxu0 %v99
    %v139 = vpop.f32.mrf.mxu0
    %v140 = vadd.f32 %v74, %v139
    %141 = vdwg.mxu0
    %v142 = vxor.u32 %v119, 2147483648
    %v143 = vmul.f32 %v142, 1.442695
    %v144 = vpow.pop %v143
    %v145 = vadd.f32 %v144, 1.0
    %v146 = vrcp.pop %v145
    %v147 = vmul.f32 %v145, %v146
    %v148 = vsub.f32 1.0, %v147
    %v149 = vmul.f32 %v146, %v148
    %v150 = vadd.f32 %v146, %v149
    %vm151 = vweird.f32 %v145
    %vm152 = vweird.f32 %v146
    %vm153 = vmor %vm151, %vm152
    %v154 = vsel %vm153, %v146, %v150
    %v155 = vand.u32 2147483647, %v145
    %vm156 = vcmp.eq.f32.partialorder %v155, 8.507059e+37
    %v157 = vand.u32 %v145, 2147483648
    %v158 = vor.u32 1.1754944e-38, %v157
    %v159 = vsel %vm156, %v158, %v154
    %v160 = vmul.f32 1.0, %v159
    %v161 = vtanh.pop %v119
    %163 = vrot.lane.b32.xlu0 %v161, 32
    %v164 = vpop.permute.xlu0 %163
    %v166 = vmul.f32 %v160, %v164
    %v167 = vtanh.pop %v166
    %169 = vrot.lane.b32.xlu0 %v167, 64
    %v170 = vpop.permute.xlu0 %169
    %v172 = vmul.f32 %v160, %v170
    %v174 = vperm.slane %v64, 0
    %177 = vrot.lane.b32.xlu0 %v172, 64
    %v178 = vpop.permute.xlu0 %177
    %vm179 = vcmask 261120
    %v180 = vsel %vm179, %v178, 0
    %182 = vmatpush.msra.mxu0 0.0
    %183 = vmatpush.msra.mxu0 0.0
    %184 = vmatpush.msra.mxu0 0.0
    %185 = vmatpush.msra.mxu0 0.0
    %186 = vmatpush.msra.mxu0 0.0
    %187 = vmatpush.msra.mxu0 0.0
    %188 = vmatpush.msra.mxu0 0.0
    %189 = vmatpush.msra.mxu0 0.0
    %190 = vmatpush.msra.mxu0 0.0
    %191 = vmatpush.msra.mxu0 0.0
    %192 = vmatpush.msra.mxu0 0.0
    %193 = vmatpush.msra.mxu0 0.0
    %194 = vmatpush.msra.mxu0 %v54
    %195 = vmatpush.msra.mxu0 %v53
    %196 = vmatpush.msra.mxu0 %v52
    %197 = vmatpush.msra.mxu0 %v51
    %198 = vmatmul.f32.gmra.mxu0 %v180
    %v199 = vpop.f32.mrf.mxu0
    %v200 = vadd.f32 %v174, %v199
    %201 = vdwg.mxu0
    %202 = vmatpush.msra.mxu0 0.0
    %203 = vmatpush.msra.mxu0 0.0
    %204 = vmatpush.msra.mxu0 0.0
    %205 = vmatpush.msra.mxu0 0.0
    %206 = vmatpush.msra.mxu0 0.0
    %207 = vmatpush.msra.mxu0 0.0
    %208 = vmatpush.msra.mxu0 0.0
    %209 = vmatpush.msra.mxu0 0.0
    %210 = vmatpush.msra.mxu0 0.0
    %211 = vmatpush.msra.mxu0 0.0
    %212 = vmatpush.msra.mxu0 0.0
    %213 = vmatpush.msra.mxu0 0.0
    %214 = vmatpush.msra.mxu0 %v58
    %215 = vmatpush.msra.mxu0 %v57
    %216 = vmatpush.msra.mxu0 %v56
    %217 = vmatpush.msra.mxu0 %v55
    %218 = vmatmul.f32.gmra.mxu0 %v180
    %v219 = vpop.f32.mrf.mxu0
    %v220 = vadd.f32 0.0, %v219
    %221 = vdwg.mxu0
    %v222 = vadd.f32 %v122, %v220
    %v223 = vxor.u32 %v222, 2147483648
    %v224 = vmul.f32 %v223, 1.442695
    %v225 = vpow.pop %v224
    %v226 = vadd.f32 %v225, 1.0
    %v227 = vrcp.pop %v226
    %v228 = vmul.f32 %v226, %v227
    %v229 = vsub.f32 1.0, %v228
    %v230 = vmul.f32 %v227, %v229
    %v231 = vadd.f32 %v227, %v230
    %vm232 = vweird.f32 %v226
    %vm233 = vweird.f32 %v227
    %vm234 = vmor %vm232, %vm233
    %v235 = vsel %vm234, %v227, %v231
    %v236 = vand.u32 2147483647, %v226
    %vm237 = vcmp.eq.f32.partialorder %v236, 8.507059e+37
    %v238 = vand.u32 %v226, 2147483648
    %v239 = vor.u32 1.1754944e-38, %v238
    %v240 = vsel %vm237, %v239, %v235
    %v241 = vmul.f32 1.0, %v240
    %v242 = vtanh.pop %v222
    %244 = vrot.lane.b32.xlu0 %v166, 32
    %v245 = vpop.permute.xlu0 %244
    %v247 = vmul.f32 %v241, %v245
    %249 = vrot.lane.b32.xlu0 %v242, 32
    %v250 = vpop.permute.xlu0 %249
    %v252 = vmul.f32 %v241, %v250
    %254 = vrot.lane.b32.xlu0 %v252, 32
    %v255 = vpop.permute.xlu0 %254
    %v257 = vadd.f32 %v247, %v255
    %v258 = vtanh.pop %v257
    %260 = vrot.lane.b32.xlu0 %v258, 32
    %v261 = vpop.permute.xlu0 %260
    %v263 = vmul.f32 %v241, %v261
    %265 = vrot.lane.b32.xlu0 %v263, 64
    %v266 = vpop.permute.xlu0 %265
    %v267 = vsel %vm179, %v266, 0
    %269 = vmatpush.msra.mxu0 0.0
    %270 = vmatpush.msra.mxu0 0.0
    %271 = vmatpush.msra.mxu0 0.0
    %272 = vmatpush.msra.mxu0 0.0
    %273 = vmatpush.msra.mxu0 0.0
    %274 = vmatpush.msra.mxu0 0.0
    %275 = vmatpush.msra.mxu0 0.0
    %276 = vmatpush.msra.mxu0 0.0
    %277 = vmatpush.msra.mxu0 0.0
    %278 = vmatpush.msra.mxu0 0.0
    %279 = vmatpush.msra.mxu0 0.0
    %280 = vmatpush.msra.mxu0 0.0
    %281 = vmatpush.msra.mxu0 %v54
    %282 = vmatpush.msra.mxu0 %v53
    %283 = vmatpush.msra.mxu0 %v52
    %284 = vmatpush.msra.mxu0 %v51
    %285 = vmatmul.f32.gmra.mxu0 %v267
    %v286 = vpop.f32.mrf.mxu0
    %v287 = vadd.f32 %v174, %v286
    %288 = vdwg.mxu0
    %v289 = vxor.u32 %v200, 2147483648
    %v290 = vmul.f32 %v289, 1.442695
    %v291 = vpow.pop %v290
    %v292 = vadd.f32 %v291, 1.0
    %v293 = vrcp.pop %v292
    %v294 = vmul.f32 %v292, %v293
    %v295 = vsub.f32 1.0, %v294
    %v296 = vmul.f32 %v293, %v295
    %v297 = vadd.f32 %v293, %v296
    %vm298 = vweird.f32 %v292
    %vm299 = vweird.f32 %v293
    %vm300 = vmor %vm298, %vm299
    %v301 = vsel %vm300, %v293, %v297
    %v302 = vand.u32 2147483647, %v292
    %vm303 = vcmp.eq.f32.partialorder %v302, 8.507059e+37
    %v304 = vand.u32 %v292, 2147483648
    %v305 = vor.u32 1.1754944e-38, %v304
    %v306 = vsel %vm303, %v305, %v301
    %v307 = vmul.f32 1.0, %v306
    %v308 = vtanh.pop %v200
    %310 = vrot.lane.b32.xlu0 %v308, 32
    %v311 = vpop.permute.xlu0 %310
    %v313 = vmul.f32 %v307, %v311
    %v314 = vtanh.pop %v313
    %316 = vrot.lane.b32.xlu0 %v314, 64
    %v317 = vpop.permute.xlu0 %316
    %v319 = vmul.f32 %v307, %v317
    %320 = vmatpush.msra.mxu0 0.0
    %321 = vmatpush.msra.mxu0 0.0
    %322 = vmatpush.msra.mxu0 0.0
    %323 = vmatpush.msra.mxu0 0.0
    %324 = vmatpush.msra.mxu0 0.0
    %325 = vmatpush.msra.mxu0 0.0
    %326 = vmatpush.msra.mxu0 0.0
    %327 = vmatpush.msra.mxu0 0.0
    %328 = vmatpush.msra.mxu0 0.0
    %329 = vmatpush.msra.mxu0 0.0
    %330 = vmatpush.msra.mxu0 0.0
    %331 = vmatpush.msra.mxu0 0.0
    %332 = vmatpush.msra.mxu0 %v58
    %333 = vmatpush.msra.mxu0 %v57
    %334 = vmatpush.msra.mxu0 %v56
    %335 = vmatpush.msra.mxu0 %v55
    %336 = vmatmul.f32.gmra.mxu0 %v267
    %v337 = vpop.f32.mrf.mxu0
    %v338 = vadd.f32 0.0, %v337
    %339 = vdwg.mxu0
    %v340 = vadd.f32 %v125, %v338
    %v341 = vxor.u32 %v340, 2147483648
    %v342 = vmul.f32 %v341, 1.442695
    %v343 = vpow.pop %v342
    %v344 = vadd.f32 %v343, 1.0
    %v345 = vrcp.pop %v344
    %v346 = vmul.f32 %v344, %v345
    %v347 = vsub.f32 1.0, %v346
    %v348 = vmul.f32 %v345, %v347
    %v349 = vadd.f32 %v345, %v348
    %vm350 = vweird.f32 %v344
    %vm351 = vweird.f32 %v345
    %vm352 = vmor %vm350, %vm351
    %v353 = vsel %vm352, %v345, %v349
    %v354 = vand.u32 2147483647, %v344
    %vm355 = vcmp.eq.f32.partialorder %v354, 8.507059e+37
    %v356 = vand.u32 %v344, 2147483648
    %v357 = vor.u32 1.1754944e-38, %v356
    %v358 = vsel %vm355, %v357, %v353
    %v359 = vmul.f32 1.0, %v358
    %v360 = vtanh.pop %v340
    %v361 = vmul.f32 %v359, %v257
    %363 = vrot.lane.b32.xlu0 %v360, 32
    %v364 = vpop.permute.xlu0 %363
    %v366 = vmul.f32 %v359, %v364
    %368 = vrot.lane.b32.xlu0 %v366, 32
    %v369 = vpop.permute.xlu0 %368
    %v371 = vadd.f32 %v361, %v369
    %v372 = vtanh.pop %v371
    %374 = vrot.lane.b32.xlu0 %v372, 32
    %v375 = vpop.permute.xlu0 %374
    %v377 = vmul.f32 %v359, %v375
    %379 = vrot.lane.b32.xlu0 %v377, 64
    %v380 = vpop.permute.xlu0 %379
    %v381 = vsel %vm179, %v380, 0
    %383 = vmatpush.msra.mxu0 0.0
    %384 = vmatpush.msra.mxu0 0.0
    %385 = vmatpush.msra.mxu0 0.0
    %386 = vmatpush.msra.mxu0 0.0
    %387 = vmatpush.msra.mxu0 0.0
    %388 = vmatpush.msra.mxu0 0.0
    %389 = vmatpush.msra.mxu0 0.0
    %390 = vmatpush.msra.mxu0 0.0
    %391 = vmatpush.msra.mxu0 0.0
    %392 = vmatpush.msra.mxu0 0.0
    %393 = vmatpush.msra.mxu0 0.0
    %394 = vmatpush.msra.mxu0 0.0
    %395 = vmatpush.msra.mxu0 %v54
    %396 = vmatpush.msra.mxu0 %v53
    %397 = vmatpush.msra.mxu0 %v52
    %398 = vmatpush.msra.mxu0 %v51
    %399 = vmatmul.f32.gmra.mxu0 %v381
    %v400 = vpop.f32.mrf.mxu0
    %v401 = vadd.f32 %v174, %v400
    %402 = vdwg.mxu0
    %404 = vrot.lane.b32.xlu0 %v319, 64
    %v405 = vpop.permute.xlu0 %404
    %v406 = vsel %vm179, %v405, 0
    %408 = vmatpush.msra.mxu0 0.0
    %409 = vmatpush.msra.mxu0 0.0
    %410 = vmatpush.msra.mxu0 0.0
    %411 = vmatpush.msra.mxu0 0.0
    %412 = vmatpush.msra.mxu0 0.0
    %413 = vmatpush.msra.mxu0 0.0
    %414 = vmatpush.msra.mxu0 0.0
    %415 = vmatpush.msra.mxu0 0.0
    %416 = vmatpush.msra.mxu0 0.0
    %417 = vmatpush.msra.mxu0 0.0
    %418 = vmatpush.msra.mxu0 0.0
    %419 = vmatpush.msra.mxu0 0.0
    %420 = vmatpush.msra.mxu0 %v62
    %421 = vmatpush.msra.mxu0 %v61
    %422 = vmatpush.msra.mxu0 %v60
    %423 = vmatpush.msra.mxu0 %v59
    %424 = vmatmul.f32.gmra.mxu0 %v406
    %v425 = vpop.f32.mrf.mxu0
    %v426 = vadd.f32 0.0, %v425
    %427 = vdwg.mxu0
    %v428 = vadd.f32 %v287, %v426
    %v429 = vxor.u32 %v428, 2147483648
    %v430 = vmul.f32 %v429, 1.442695
    %v431 = vpow.pop %v430
    %v432 = vadd.f32 %v431, 1.0
    %v433 = vrcp.pop %v432
    %v434 = vmul.f32 %v432, %v433
    %v435 = vsub.f32 1.0, %v434
    %v436 = vmul.f32 %v433, %v435
    %v437 = vadd.f32 %v433, %v436
    %vm438 = vweird.f32 %v432
    %vm439 = vweird.f32 %v433
    %vm440 = vmor %vm438, %vm439
    %v441 = vsel %vm440, %v433, %v437
    %v442 = vand.u32 2147483647, %v432
    %vm443 = vcmp.eq.f32.partialorder %v442, 8.507059e+37
    %v444 = vand.u32 %v432, 2147483648
    %v445 = vor.u32 1.1754944e-38, %v444
    %v446 = vsel %vm443, %v445, %v441
    %v447 = vmul.f32 1.0, %v446
    %v448 = vtanh.pop %v428
    %450 = vrot.lane.b32.xlu0 %v313, 32
    %v451 = vpop.permute.xlu0 %450
    %v453 = vmul.f32 %v447, %v451
    %455 = vrot.lane.b32.xlu0 %v448, 32
    %v456 = vpop.permute.xlu0 %455
    %v458 = vmul.f32 %v447, %v456
    %460 = vrot.lane.b32.xlu0 %v458, 32
    %v461 = vpop.permute.xlu0 %460
    %v463 = vadd.f32 %v453, %v461
    %v464 = vtanh.pop %v463
    %466 = vrot.lane.b32.xlu0 %v464, 32
    %v467 = vpop.permute.xlu0 %466
    %v469 = vmul.f32 %v447, %v467
    %470 = vmatpush.msra.mxu0 0.0
    %471 = vmatpush.msra.mxu0 0.0
    %472 = vmatpush.msra.mxu0 0.0
    %473 = vmatpush.msra.mxu0 0.0
    %474 = vmatpush.msra.mxu0 0.0
    %475 = vmatpush.msra.mxu0 0.0
    %476 = vmatpush.msra.mxu0 0.0
    %477 = vmatpush.msra.mxu0 0.0
    %478 = vmatpush.msra.mxu0 0.0
    %479 = vmatpush.msra.mxu0 0.0
    %480 = vmatpush.msra.mxu0 0.0
    %481 = vmatpush.msra.mxu0 0.0
    %482 = vmatpush.msra.mxu0 %v58
    %483 = vmatpush.msra.mxu0 %v57
    %484 = vmatpush.msra.mxu0 %v56
    %485 = vmatpush.msra.mxu0 %v55
    %486 = vmatmul.f32.gmra.mxu0 %v381
    %v487 = vpop.f32.mrf.mxu0
    %v488 = vadd.f32 0.0, %v487
    %489 = vdwg.mxu0
    %v490 = vadd.f32 %v128, %v488
    %v491 = vxor.u32 %v490, 2147483648
    %v492 = vmul.f32 %v491, 1.442695
    %v493 = vpow.pop %v492
    %v494 = vadd.f32 %v493, 1.0
    %v495 = vrcp.pop %v494
    %v496 = vmul.f32 %v494, %v495
    %v497 = vsub.f32 1.0, %v496
    %v498 = vmul.f32 %v495, %v497
    %v499 = vadd.f32 %v495, %v498
    %vm500 = vweird.f32 %v494
    %vm501 = vweird.f32 %v495
    %vm502 = vmor %vm500, %vm501
    %v503 = vsel %vm502, %v495, %v499
    %v504 = vand.u32 2147483647, %v494
    %vm505 = vcmp.eq.f32.partialorder %v504, 8.507059e+37
    %v506 = vand.u32 %v494, 2147483648
    %v507 = vor.u32 1.1754944e-38, %v506
    %v508 = vsel %vm505, %v507, %v503
    %v509 = vmul.f32 1.0, %v508
    %v510 = vtanh.pop %v490
    %v511 = vmul.f32 %v509, %v371
    %513 = vrot.lane.b32.xlu0 %v510, 32
    %v514 = vpop.permute.xlu0 %513
    %v516 = vmul.f32 %v509, %v514
    %518 = vrot.lane.b32.xlu0 %v516, 32
    %v519 = vpop.permute.xlu0 %518
    %v521 = vadd.f32 %v511, %v519
    %v522 = vtanh.pop %v521
    %524 = vrot.lane.b32.xlu0 %v522, 32
    %v525 = vpop.permute.xlu0 %524
    %v527 = vmul.f32 %v509, %v525
    %529 = vrot.lane.b32.xlu0 %v527, 64
    %v530 = vpop.permute.xlu0 %529
    %v531 = vsel %vm179, %v530, 0
    %533 = vmatpush.msra.mxu0 0.0
    %534 = vmatpush.msra.mxu0 0.0
    %535 = vmatpush.msra.mxu0 0.0
    %536 = vmatpush.msra.mxu0 0.0
    %537 = vmatpush.msra.mxu0 0.0
    %538 = vmatpush.msra.mxu0 0.0
    %539 = vmatpush.msra.mxu0 0.0
    %540 = vmatpush.msra.mxu0 0.0
    %541 = vmatpush.msra.mxu0 0.0
    %542 = vmatpush.msra.mxu0 0.0
    %543 = vmatpush.msra.mxu0 0.0
    %544 = vmatpush.msra.mxu0 0.0
    %545 = vmatpush.msra.mxu0 %v54
    %546 = vmatpush.msra.mxu0 %v53
    %547 = vmatpush.msra.mxu0 %v52
    %548 = vmatpush.msra.mxu0 %v51
    %549 = vmatmul.f32.gmra.mxu0 %v531
    %v550 = vpop.f32.mrf.mxu0
    %v551 = vadd.f32 %v174, %v550
    %552 = vdwg.mxu0
    %554 = vrot.lane.b32.xlu0 %v469, 64
    %v555 = vpop.permute.xlu0 %554
    %v556 = vsel %vm179, %v555, 0
    %558 = vmatpush.msra.mxu0 0.0
    %559 = vmatpush.msra.mxu0 0.0
    %560 = vmatpush.msra.mxu0 0.0
    %561 = vmatpush.msra.mxu0 0.0
    %562 = vmatpush.msra.mxu0 0.0
    %563 = vmatpush.msra.mxu0 0.0
    %564 = vmatpush.msra.mxu0 0.0
    %565 = vmatpush.msra.mxu0 0.0
    %566 = vmatpush.msra.mxu0 0.0
    %567 = vmatpush.msra.mxu0 0.0
    %568 = vmatpush.msra.mxu0 0.0
    %569 = vmatpush.msra.mxu0 0.0
    %570 = vmatpush.msra.mxu0 %v62
    %571 = vmatpush.msra.mxu0 %v61
    %572 = vmatpush.msra.mxu0 %v60
    %573 = vmatpush.msra.mxu0 %v59
    %574 = vmatmul.f32.gmra.mxu0 %v556
    %v575 = vpop.f32.mrf.mxu0
    %v576 = vadd.f32 0.0, %v575
    %577 = vdwg.mxu0
    %v578 = vadd.f32 %v401, %v576
    %v579 = vxor.u32 %v578, 2147483648
    %v580 = vmul.f32 %v579, 1.442695
    %v581 = vpow.pop %v580
    %v582 = vadd.f32 %v581, 1.0
    %v583 = vrcp.pop %v582
    %v584 = vmul.f32 %v582, %v583
    %v585 = vsub.f32 1.0, %v584
    %v586 = vmul.f32 %v583, %v585
    %v587 = vadd.f32 %v583, %v586
    %vm588 = vweird.f32 %v582
    %vm589 = vweird.f32 %v583
    %vm590 = vmor %vm588, %vm589
    %v591 = vsel %vm590, %v583, %v587
    %v592 = vand.u32 2147483647, %v582
    %vm593 = vcmp.eq.f32.partialorder %v592, 8.507059e+37
    %v594 = vand.u32 %v582, 2147483648
    %v595 = vor.u32 1.1754944e-38, %v594
    %v596 = vsel %vm593, %v595, %v591
    %v597 = vmul.f32 1.0, %v596
    %v598 = vtanh.pop %v578
    %v599 = vmul.f32 %v597, %v463
    %601 = vrot.lane.b32.xlu0 %v598, 32
    %v602 = vpop.permute.xlu0 %601
    %v604 = vmul.f32 %v597, %v602
    %606 = vrot.lane.b32.xlu0 %v604, 32
    %v607 = vpop.permute.xlu0 %606
    %v609 = vadd.f32 %v599, %v607
    %v610 = vtanh.pop %v609
    %612 = vrot.lane.b32.xlu0 %v610, 32
    %v613 = vpop.permute.xlu0 %612
    %v615 = vmul.f32 %v597, %v613
    %616 = vmatpush.msra.mxu0 0.0
    %617 = vmatpush.msra.mxu0 0.0
    %618 = vmatpush.msra.mxu0 0.0
    %619 = vmatpush.msra.mxu0 0.0
    %620 = vmatpush.msra.mxu0 0.0
    %621 = vmatpush.msra.mxu0 0.0
    %622 = vmatpush.msra.mxu0 0.0
    %623 = vmatpush.msra.mxu0 0.0
    %624 = vmatpush.msra.mxu0 0.0
    %625 = vmatpush.msra.mxu0 0.0
    %626 = vmatpush.msra.mxu0 0.0
    %627 = vmatpush.msra.mxu0 0.0
    %628 = vmatpush.msra.mxu0 %v58
    %629 = vmatpush.msra.mxu0 %v57
    %630 = vmatpush.msra.mxu0 %v56
    %631 = vmatpush.msra.mxu0 %v55
    %632 = vmatmul.f32.gmra.mxu0 %v531
    %v633 = vpop.f32.mrf.mxu0
    %v634 = vadd.f32 0.0, %v633
    %635 = vdwg.mxu0
    %v636 = vadd.f32 %v131, %v634
    %v637 = vxor.u32 %v636, 2147483648
    %v638 = vmul.f32 %v637, 1.442695
    %v639 = vpow.pop %v638
    %v640 = vadd.f32 %v639, 1.0
    %v641 = vrcp.pop %v640
    %v642 = vmul.f32 %v640, %v641
    %v643 = vsub.f32 1.0, %v642
    %v644 = vmul.f32 %v641, %v643
    %v645 = vadd.f32 %v641, %v644
    %vm646 = vweird.f32 %v640
    %vm647 = vweird.f32 %v641
    %vm648 = vmor %vm646, %vm647
    %v649 = vsel %vm648, %v641, %v645
    %v650 = vand.u32 2147483647, %v640
    %vm651 = vcmp.eq.f32.partialorder %v650, 8.507059e+37
    %v652 = vand.u32 %v640, 2147483648
    %v653 = vor.u32 1.1754944e-38, %v652
    %v654 = vsel %vm651, %v653, %v649
    %v655 = vmul.f32 1.0, %v654
    %v656 = vtanh.pop %v636
    %v657 = vmul.f32 %v655, %v521
    %659 = vrot.lane.b32.xlu0 %v656, 32
    %v660 = vpop.permute.xlu0 %659
    %v662 = vmul.f32 %v655, %v660
    %664 = vrot.lane.b32.xlu0 %v662, 32
    %v665 = vpop.permute.xlu0 %664
    %v667 = vadd.f32 %v657, %v665
    %v668 = vtanh.pop %v667
    %670 = vrot.lane.b32.xlu0 %v668, 32
    %v671 = vpop.permute.xlu0 %670
    %v673 = vmul.f32 %v655, %v671
    %675 = vrot.lane.b32.xlu0 %v673, 64
    %v676 = vpop.permute.xlu0 %675
    %v677 = vsel %vm179, %v676, 0
    %679 = vmatpush.msra.mxu0 0.0
    %680 = vmatpush.msra.mxu0 0.0
    %681 = vmatpush.msra.mxu0 0.0
    %682 = vmatpush.msra.mxu0 0.0
    %683 = vmatpush.msra.mxu0 0.0
    %684 = vmatpush.msra.mxu0 0.0
    %685 = vmatpush.msra.mxu0 0.0
    %686 = vmatpush.msra.mxu0 0.0
    %687 = vmatpush.msra.mxu0 0.0
    %688 = vmatpush.msra.mxu0 0.0
    %689 = vmatpush.msra.mxu0 0.0
    %690 = vmatpush.msra.mxu0 0.0
    %691 = vmatpush.msra.mxu0 %v54
    %692 = vmatpush.msra.mxu0 %v53
    %693 = vmatpush.msra.mxu0 %v52
    %694 = vmatpush.msra.mxu0 %v51
    %695 = vmatmul.f32.gmra.mxu0 %v677
    %v696 = vpop.f32.mrf.mxu0
    %v697 = vadd.f32 %v174, %v696
    %698 = vdwg.mxu0
    %700 = vrot.lane.b32.xlu0 %v615, 64
    %v701 = vpop.permute.xlu0 %700
    %v702 = vsel %vm179, %v701, 0
    %704 = vmatpush.msra.mxu0 0.0
    %705 = vmatpush.msra.mxu0 0.0
    %706 = vmatpush.msra.mxu0 0.0
    %707 = vmatpush.msra.mxu0 0.0
    %708 = vmatpush.msra.mxu0 0.0
    %709 = vmatpush.msra.mxu0 0.0
    %710 = vmatpush.msra.mxu0 0.0
    %711 = vmatpush.msra.mxu0 0.0
    %712 = vmatpush.msra.mxu0 0.0
    %713 = vmatpush.msra.mxu0 0.0
    %714 = vmatpush.msra.mxu0 0.0
    %715 = vmatpush.msra.mxu0 0.0
    %716 = vmatpush.msra.mxu0 %v62
    %717 = vmatpush.msra.mxu0 %v61
    %718 = vmatpush.msra.mxu0 %v60
    %719 = vmatpush.msra.mxu0 %v59
    %720 = vmatmul.f32.gmra.mxu0 %v702
    %v721 = vpop.f32.mrf.mxu0
    %v722 = vadd.f32 0.0, %v721
    %723 = vdwg.mxu0
    %v724 = vadd.f32 %v551, %v722
    %v725 = vxor.u32 %v724, 2147483648
    %v726 = vmul.f32 %v725, 1.442695
    %v727 = vpow.pop %v726
    %v728 = vadd.f32 %v727, 1.0
    %v729 = vrcp.pop %v728
    %v730 = vmul.f32 %v728, %v729
    %v731 = vsub.f32 1.0, %v730
    %v732 = vmul.f32 %v729, %v731
    %v733 = vadd.f32 %v729, %v732
    %vm734 = vweird.f32 %v728
    %vm735 = vweird.f32 %v729
    %vm736 = vmor %vm734, %vm735
    %v737 = vsel %vm736, %v729, %v733
    %v738 = vand.u32 2147483647, %v728
    %vm739 = vcmp.eq.f32.partialorder %v738, 8.507059e+37
    %v740 = vand.u32 %v728, 2147483648
    %v741 = vor.u32 1.1754944e-38, %v740
    %v742 = vsel %vm739, %v741, %v737
    %v743 = vmul.f32 1.0, %v742
    %v744 = vtanh.pop %v724
    %v745 = vmul.f32 %v743, %v609
    %747 = vrot.lane.b32.xlu0 %v744, 32
    %v748 = vpop.permute.xlu0 %747
    %v750 = vmul.f32 %v743, %v748
    %752 = vrot.lane.b32.xlu0 %v750, 32
    %v753 = vpop.permute.xlu0 %752
    %v755 = vadd.f32 %v745, %v753
    %v756 = vtanh.pop %v755
    %758 = vrot.lane.b32.xlu0 %v756, 32
    %v759 = vpop.permute.xlu0 %758
    %v761 = vmul.f32 %v743, %v759
    %762 = vmatpush.msra.mxu0 0.0
    %763 = vmatpush.msra.mxu0 0.0
    %764 = vmatpush.msra.mxu0 0.0
    %765 = vmatpush.msra.mxu0 0.0
    %766 = vmatpush.msra.mxu0 0.0
    %767 = vmatpush.msra.mxu0 0.0
    %768 = vmatpush.msra.mxu0 0.0
    %769 = vmatpush.msra.mxu0 0.0
    %770 = vmatpush.msra.mxu0 0.0
    %771 = vmatpush.msra.mxu0 0.0
    %772 = vmatpush.msra.mxu0 0.0
    %773 = vmatpush.msra.mxu0 0.0
    %774 = vmatpush.msra.mxu0 %v58
    %775 = vmatpush.msra.mxu0 %v57
    %776 = vmatpush.msra.mxu0 %v56
    %777 = vmatpush.msra.mxu0 %v55
    %778 = vmatmul.f32.gmra.mxu0 %v677
    %v779 = vpop.f32.mrf.mxu0
    %v780 = vadd.f32 0.0, %v779
    %781 = vdwg.mxu0
    %v782 = vadd.f32 %v134, %v780
    %v783 = vxor.u32 %v782, 2147483648
    %v784 = vmul.f32 %v783, 1.442695
    %v785 = vpow.pop %v784
    %v786 = vadd.f32 %v785, 1.0
    %v787 = vrcp.pop %v786
    %v788 = vmul.f32 %v786, %v787
    %v789 = vsub.f32 1.0, %v788
    %v790 = vmul.f32 %v787, %v789
    %v791 = vadd.f32 %v787, %v790
    %vm792 = vweird.f32 %v786
    %vm793 = vweird.f32 %v787
    %vm794 = vmor %vm792, %vm793
    %v795 = vsel %vm794, %v787, %v791
    %v796 = vand.u32 2147483647, %v786
    %vm797 = vcmp.eq.f32.partialorder %v796, 8.507059e+37
    %v798 = vand.u32 %v786, 2147483648
    %v799 = vor.u32 1.1754944e-38, %v798
    %v800 = vsel %vm797, %v799, %v795
    %v801 = vmul.f32 1.0, %v800
    %v802 = vtanh.pop %v782
    %v803 = vmul.f32 %v801, %v667
    %805 = vrot.lane.b32.xlu0 %v802, 32
    %v806 = vpop.permute.xlu0 %805
    %v808 = vmul.f32 %v801, %v806
    %810 = vrot.lane.b32.xlu0 %v808, 32
    %v811 = vpop.permute.xlu0 %810
    %v813 = vadd.f32 %v803, %v811
    %v814 = vtanh.pop %v813
    %816 = vrot.lane.b32.xlu0 %v814, 32
    %v817 = vpop.permute.xlu0 %816
    %v819 = vmul.f32 %v801, %v817
    %821 = vrot.lane.b32.xlu0 %v819, 64
    %v822 = vpop.permute.xlu0 %821
    %v823 = vsel %vm179, %v822, 0
    %825 = vmatpush.msra.mxu0 0.0
    %826 = vmatpush.msra.mxu0 0.0
    %827 = vmatpush.msra.mxu0 0.0
    %828 = vmatpush.msra.mxu0 0.0
    %829 = vmatpush.msra.mxu0 0.0
    %830 = vmatpush.msra.mxu0 0.0
    %831 = vmatpush.msra.mxu0 0.0
    %832 = vmatpush.msra.mxu0 0.0
    %833 = vmatpush.msra.mxu0 0.0
    %834 = vmatpush.msra.mxu0 0.0
    %835 = vmatpush.msra.mxu0 0.0
    %836 = vmatpush.msra.mxu0 0.0
    %837 = vmatpush.msra.mxu0 %v54
    %838 = vmatpush.msra.mxu0 %v53
    %839 = vmatpush.msra.mxu0 %v52
    %840 = vmatpush.msra.mxu0 %v51
    %841 = vmatmul.f32.gmra.mxu0 %v823
    %v842 = vpop.f32.mrf.mxu0
    %v843 = vadd.f32 %v174, %v842
    %844 = vdwg.mxu0
    %846 = vrot.lane.b32.xlu0 %v761, 64
    %v847 = vpop.permute.xlu0 %846
    %v848 = vsel %vm179, %v847, 0
    %850 = vmatpush.msra.mxu0 0.0
    %851 = vmatpush.msra.mxu0 0.0
    %852 = vmatpush.msra.mxu0 0.0
    %853 = vmatpush.msra.mxu0 0.0
    %854 = vmatpush.msra.mxu0 0.0
    %855 = vmatpush.msra.mxu0 0.0
    %856 = vmatpush.msra.mxu0 0.0
    %857 = vmatpush.msra.mxu0 0.0
    %858 = vmatpush.msra.mxu0 0.0
    %859 = vmatpush.msra.mxu0 0.0
    %860 = vmatpush.msra.mxu0 0.0
    %861 = vmatpush.msra.mxu0 0.0
    %862 = vmatpush.msra.mxu0 %v62
    %863 = vmatpush.msra.mxu0 %v61
    %864 = vmatpush.msra.mxu0 %v60
    %865 = vmatpush.msra.mxu0 %v59
    %866 = vmatmul.f32.gmra.mxu0 %v848
    %v867 = vpop.f32.mrf.mxu0
    %v868 = vadd.f32 0.0, %v867
    %869 = vdwg.mxu0
    %v870 = vadd.f32 %v697, %v868
    %v871 = vxor.u32 %v870, 2147483648
    %v872 = vmul.f32 %v871, 1.442695
    %v873 = vpow.pop %v872
    %v874 = vadd.f32 %v873, 1.0
    %v875 = vrcp.pop %v874
    %v876 = vmul.f32 %v874, %v875
    %v877 = vsub.f32 1.0, %v876
    %v878 = vmul.f32 %v875, %v877
    %v879 = vadd.f32 %v875, %v878
    %vm880 = vweird.f32 %v874
    %vm881 = vweird.f32 %v875
    %vm882 = vmor %vm880, %vm881
    %v883 = vsel %vm882, %v875, %v879
    %v884 = vand.u32 2147483647, %v874
    %vm885 = vcmp.eq.f32.partialorder %v884, 8.507059e+37
    %v886 = vand.u32 %v874, 2147483648
    %v887 = vor.u32 1.1754944e-38, %v886
    %v888 = vsel %vm885, %v887, %v883
    %v889 = vmul.f32 1.0, %v888
    %v890 = vtanh.pop %v870
    %v891 = vmul.f32 %v889, %v755
    %893 = vrot.lane.b32.xlu0 %v890, 32
    %v894 = vpop.permute.xlu0 %893
    %v896 = vmul.f32 %v889, %v894
    %898 = vrot.lane.b32.xlu0 %v896, 32
    %v899 = vpop.permute.xlu0 %898
    %v901 = vadd.f32 %v891, %v899
    %v902 = vtanh.pop %v901
    %904 = vrot.lane.b32.xlu0 %v902, 32
    %v905 = vpop.permute.xlu0 %904
    %v907 = vmul.f32 %v889, %v905
    %908 = vmatpush.msra.mxu0 0.0
    %909 = vmatpush.msra.mxu0 0.0
    %910 = vmatpush.msra.mxu0 0.0
    %911 = vmatpush.msra.mxu0 0.0
    %912 = vmatpush.msra.mxu0 0.0
    %913 = vmatpush.msra.mxu0 0.0
    %914 = vmatpush.msra.mxu0 0.0
    %915 = vmatpush.msra.mxu0 0.0
    %916 = vmatpush.msra.mxu0 0.0
    %917 = vmatpush.msra.mxu0 0.0
    %918 = vmatpush.msra.mxu0 0.0
    %919 = vmatpush.msra.mxu0 0.0
    %920 = vmatpush.msra.mxu0 %v58
    %921 = vmatpush.msra.mxu0 %v57
    %922 = vmatpush.msra.mxu0 %v56
    %923 = vmatpush.msra.mxu0 %v55
    %924 = vmatmul.f32.gmra.mxu0 %v823
    %v925 = vpop.f32.mrf.mxu0
    %v926 = vadd.f32 0.0, %v925
    %927 = vdwg.mxu0
    %v928 = vadd.f32 %v137, %v926
    %v929 = vxor.u32 %v928, 2147483648
    %v930 = vmul.f32 %v929, 1.442695
    %v931 = vpow.pop %v930
    %v932 = vadd.f32 %v931, 1.0
    %v933 = vrcp.pop %v932
    %v934 = vmul.f32 %v932, %v933
    %v935 = vsub.f32 1.0, %v934
    %v936 = vmul.f32 %v933, %v935
    %v937 = vadd.f32 %v933, %v936
    %vm938 = vweird.f32 %v932
    %vm939 = vweird.f32 %v933
    %vm940 = vmor %vm938, %vm939
    %v941 = vsel %vm940, %v933, %v937
    %v942 = vand.u32 2147483647, %v932
    %vm943 = vcmp.eq.f32.partialorder %v942, 8.507059e+37
    %v944 = vand.u32 %v932, 2147483648
    %v945 = vor.u32 1.1754944e-38, %v944
    %v946 = vsel %vm943, %v945, %v941
    %v947 = vmul.f32 1.0, %v946
    %v948 = vtanh.pop %v928
    %v949 = vmul.f32 %v947, %v813
    %951 = vrot.lane.b32.xlu0 %v948, 32
    %v952 = vpop.permute.xlu0 %951
    %v954 = vmul.f32 %v947, %v952
    %956 = vrot.lane.b32.xlu0 %v954, 32
    %v957 = vpop.permute.xlu0 %956
    %v959 = vadd.f32 %v949, %v957
    %v960 = vtanh.pop %v959
    %962 = vrot.lane.b32.xlu0 %v960, 32
    %v963 = vpop.permute.xlu0 %962
    %v965 = vmul.f32 %v947, %v963
    %967 = vrot.lane.b32.xlu0 %v965, 64
    %v968 = vpop.permute.xlu0 %967
    %v969 = vsel %vm179, %v968, 0
    %971 = vmatpush.msra.mxu0 0.0
    %972 = vmatpush.msra.mxu0 0.0
    %973 = vmatpush.msra.mxu0 0.0
    %974 = vmatpush.msra.mxu0 0.0
    %975 = vmatpush.msra.mxu0 0.0
    %976 = vmatpush.msra.mxu0 0.0
    %977 = vmatpush.msra.mxu0 0.0
    %978 = vmatpush.msra.mxu0 0.0
    %979 = vmatpush.msra.mxu0 0.0
    %980 = vmatpush.msra.mxu0 0.0
    %981 = vmatpush.msra.mxu0 0.0
    %982 = vmatpush.msra.mxu0 0.0
    %983 = vmatpush.msra.mxu0 %v54
    %984 = vmatpush.msra.mxu0 %v53
    %985 = vmatpush.msra.mxu0 %v52
    %986 = vmatpush.msra.mxu0 %v51
    %987 = vmatmul.f32.gmra.mxu0 %v969
    %v988 = vpop.f32.mrf.mxu0
    %v989 = vadd.f32 %v174, %v988
    %990 = vdwg.mxu0
    %992 = vrot.lane.b32.xlu0 %v907, 64
    %v993 = vpop.permute.xlu0 %992
    %v994 = vsel %vm179, %v993, 0
    %996 = vmatpush.msra.mxu0 0.0
    %997 = vmatpush.msra.mxu0 0.0
    %998 = vmatpush.msra.mxu0 0.0
    %999 = vmatpush.msra.mxu0 0.0
    %1000 = vmatpush.msra.mxu0 0.0
    %1001 = vmatpush.msra.mxu0 0.0
    %1002 = vmatpush.msra.mxu0 0.0
    %1003 = vmatpush.msra.mxu0 0.0
    %1004 = vmatpush.msra.mxu0 0.0
    %1005 = vmatpush.msra.mxu0 0.0
    %1006 = vmatpush.msra.mxu0 0.0
    %1007 = vmatpush.msra.mxu0 0.0
    %1008 = vmatpush.msra.mxu0 %v62
    %1009 = vmatpush.msra.mxu0 %v61
    %1010 = vmatpush.msra.mxu0 %v60
    %1011 = vmatpush.msra.mxu0 %v59
    %1012 = vmatmul.f32.gmra.mxu0 %v994
    %v1013 = vpop.f32.mrf.mxu0
    %v1014 = vadd.f32 0.0, %v1013
    %1015 = vdwg.mxu0
    %v1016 = vadd.f32 %v843, %v1014
    %v1017 = vxor.u32 %v1016, 2147483648
    %v1018 = vmul.f32 %v1017, 1.442695
    %v1019 = vpow.pop %v1018
    %v1020 = vadd.f32 %v1019, 1.0
    %v1021 = vrcp.pop %v1020
    %v1022 = vmul.f32 %v1020, %v1021
    %v1023 = vsub.f32 1.0, %v1022
    %v1024 = vmul.f32 %v1021, %v1023
    %v1025 = vadd.f32 %v1021, %v1024
    %vm1026 = vweird.f32 %v1020
    %vm1027 = vweird.f32 %v1021
    %vm1028 = vmor %vm1026, %vm1027
    %v1029 = vsel %vm1028, %v1021, %v1025
    %v1030 = vand.u32 2147483647, %v1020
    %vm1031 = vcmp.eq.f32.partialorder %v1030, 8.507059e+37
    %v1032 = vand.u32 %v1020, 2147483648
    %v1033 = vor.u32 1.1754944e-38, %v1032
    %v1034 = vsel %vm1031, %v1033, %v1029
    %v1035 = vmul.f32 1.0, %v1034
    %v1036 = vtanh.pop %v1016
    %v1037 = vmul.f32 %v1035, %v901
    %1039 = vrot.lane.b32.xlu0 %v1036, 32
    %v1040 = vpop.permute.xlu0 %1039
    %v1042 = vmul.f32 %v1035, %v1040
    %1044 = vrot.lane.b32.xlu0 %v1042, 32
    %v1045 = vpop.permute.xlu0 %1044
    %v1047 = vadd.f32 %v1037, %v1045
    %v1048 = vtanh.pop %v1047
    %1050 = vrot.lane.b32.xlu0 %v1048, 32
    %v1051 = vpop.permute.xlu0 %1050
    %v1053 = vmul.f32 %v1035, %v1051
    %1054 = vmatpush.msra.mxu0 0.0
    %1055 = vmatpush.msra.mxu0 0.0
    %1056 = vmatpush.msra.mxu0 0.0
    %1057 = vmatpush.msra.mxu0 0.0
    %1058 = vmatpush.msra.mxu0 0.0
    %1059 = vmatpush.msra.mxu0 0.0
    %1060 = vmatpush.msra.mxu0 0.0
    %1061 = vmatpush.msra.mxu0 0.0
    %1062 = vmatpush.msra.mxu0 0.0
    %1063 = vmatpush.msra.mxu0 0.0
    %1064 = vmatpush.msra.mxu0 0.0
    %1065 = vmatpush.msra.mxu0 0.0
    %1066 = vmatpush.msra.mxu0 %v58
    %1067 = vmatpush.msra.mxu0 %v57
    %1068 = vmatpush.msra.mxu0 %v56
    %1069 = vmatpush.msra.mxu0 %v55
    %1070 = vmatmul.f32.gmra.mxu0 %v969
    %v1071 = vpop.f32.mrf.mxu0
    %v1072 = vadd.f32 0.0, %v1071
    %1073 = vdwg.mxu0
    %v1074 = vadd.f32 %v140, %v1072
    %v1075 = vxor.u32 %v1074, 2147483648
    %v1076 = vmul.f32 %v1075, 1.442695
    %v1077 = vpow.pop %v1076
    %v1078 = vadd.f32 %v1077, 1.0
    %v1079 = vrcp.pop %v1078
    %v1080 = vmul.f32 %v1078, %v1079
    %v1081 = vsub.f32 1.0, %v1080
    %v1082 = vmul.f32 %v1079, %v1081
    %v1083 = vadd.f32 %v1079, %v1082
    %vm1084 = vweird.f32 %v1078
    %vm1085 = vweird.f32 %v1079
    %vm1086 = vmor %vm1084, %vm1085
    %v1087 = vsel %vm1086, %v1079, %v1083
    %v1088 = vand.u32 2147483647, %v1078
    %vm1089 = vcmp.eq.f32.partialorder %v1088, 8.507059e+37
    %v1090 = vand.u32 %v1078, 2147483648
    %v1091 = vor.u32 1.1754944e-38, %v1090
    %v1092 = vsel %vm1089, %v1091, %v1087
    %v1093 = vmul.f32 1.0, %v1092
    %v1094 = vtanh.pop %v1074
    %v1095 = vmul.f32 %v1093, %v959
    %1097 = vrot.lane.b32.xlu0 %v1094, 32
    %v1098 = vpop.permute.xlu0 %1097
    %v1100 = vmul.f32 %v1093, %v1098
    %1102 = vrot.lane.b32.xlu0 %v1100, 32
    %v1103 = vpop.permute.xlu0 %1102
    %v1105 = vadd.f32 %v1095, %v1103
    %v1106 = vtanh.pop %v1105
    %1108 = vrot.lane.b32.xlu0 %v1106, 32
    %v1109 = vpop.permute.xlu0 %1108
    %v1111 = vmul.f32 %v1093, %v1109
    %1113 = vrot.lane.b32.xlu0 %v1111, 64
    %v1114 = vpop.permute.xlu0 %1113
    %v1115 = vsel %vm179, %v1114, 0
    %1117 = vmatpush.msra.mxu0 0.0
    %1118 = vmatpush.msra.mxu0 0.0
    %1119 = vmatpush.msra.mxu0 0.0
    %1120 = vmatpush.msra.mxu0 0.0
    %1121 = vmatpush.msra.mxu0 0.0
    %1122 = vmatpush.msra.mxu0 0.0
    %1123 = vmatpush.msra.mxu0 0.0
    %1124 = vmatpush.msra.mxu0 0.0
    %1125 = vmatpush.msra.mxu0 0.0
    %1126 = vmatpush.msra.mxu0 0.0
    %1127 = vmatpush.msra.mxu0 0.0
    %1128 = vmatpush.msra.mxu0 0.0
    %1129 = vmatpush.msra.mxu0 %v54
    %1130 = vmatpush.msra.mxu0 %v53
    %1131 = vmatpush.msra.mxu0 %v52
    %1132 = vmatpush.msra.mxu0 %v51
    %1133 = vmatmul.f32.gmra.mxu0 %v1115
    %v1134 = vpop.f32.mrf.mxu0
    %v1135 = vadd.f32 %v174, %v1134
    %1136 = vdwg.mxu0
    %1138 = vrot.lane.b32.xlu0 %v1053, 64
    %v1139 = vpop.permute.xlu0 %1138
    %v1140 = vsel %vm179, %v1139, 0
    %1142 = vmatpush.msra.mxu0 0.0
    %1143 = vmatpush.msra.mxu0 0.0
    %1144 = vmatpush.msra.mxu0 0.0
    %1145 = vmatpush.msra.mxu0 0.0
    %1146 = vmatpush.msra.mxu0 0.0
    %1147 = vmatpush.msra.mxu0 0.0
    %1148 = vmatpush.msra.mxu0 0.0
    %1149 = vmatpush.msra.mxu0 0.0
    %1150 = vmatpush.msra.mxu0 0.0
    %1151 = vmatpush.msra.mxu0 0.0
    %1152 = vmatpush.msra.mxu0 0.0
    %1153 = vmatpush.msra.mxu0 0.0
    %1154 = vmatpush.msra.mxu0 %v62
    %1155 = vmatpush.msra.mxu0 %v61
    %1156 = vmatpush.msra.mxu0 %v60
    %1157 = vmatpush.msra.mxu0 %v59
    %1158 = vmatmul.f32.gmra.mxu0 %v1140
    %v1159 = vpop.f32.mrf.mxu0
    %v1160 = vadd.f32 0.0, %v1159
    %1161 = vdwg.mxu0
    %v1162 = vadd.f32 %v989, %v1160
    %v1163 = vxor.u32 %v1162, 2147483648
    %v1164 = vmul.f32 %v1163, 1.442695
    %v1165 = vpow.pop %v1164
    %v1166 = vadd.f32 %v1165, 1.0
    %v1167 = vrcp.pop %v1166
    %v1168 = vmul.f32 %v1166, %v1167
    %v1169 = vsub.f32 1.0, %v1168
    %v1170 = vmul.f32 %v1167, %v1169
    %v1171 = vadd.f32 %v1167, %v1170
    %vm1172 = vweird.f32 %v1166
    %vm1173 = vweird.f32 %v1167
    %vm1174 = vmor %vm1172, %vm1173
    %v1175 = vsel %vm1174, %v1167, %v1171
    %v1176 = vand.u32 2147483647, %v1166
    %vm1177 = vcmp.eq.f32.partialorder %v1176, 8.507059e+37
    %v1178 = vand.u32 %v1166, 2147483648
    %v1179 = vor.u32 1.1754944e-38, %v1178
    %v1180 = vsel %vm1177, %v1179, %v1175
    %v1181 = vmul.f32 1.0, %v1180
    %v1182 = vtanh.pop %v1162
    %v1183 = vmul.f32 %v1181, %v1047
    %1185 = vrot.lane.b32.xlu0 %v1182, 32
    %v1186 = vpop.permute.xlu0 %1185
    %v1188 = vmul.f32 %v1181, %v1186
    %1190 = vrot.lane.b32.xlu0 %v1188, 32
    %v1191 = vpop.permute.xlu0 %1190
    %v1193 = vadd.f32 %v1183, %v1191
    %v1194 = vtanh.pop %v1193
    %1196 = vrot.lane.b32.xlu0 %v1194, 32
    %v1197 = vpop.permute.xlu0 %1196
    %v1199 = vmul.f32 %v1181, %v1197
    %1201 = vrot.lane.b32.xlu0 %v1199, 64
    %v1202 = vpop.permute.xlu0 %1201
    %v1203 = vsel %vm179, %v1202, 0
    %1205 = vmatpush.msra.mxu0 0.0
    %1206 = vmatpush.msra.mxu0 0.0
    %1207 = vmatpush.msra.mxu0 0.0
    %1208 = vmatpush.msra.mxu0 0.0
    %1209 = vmatpush.msra.mxu0 0.0
    %1210 = vmatpush.msra.mxu0 0.0
    %1211 = vmatpush.msra.mxu0 0.0
    %1212 = vmatpush.msra.mxu0 0.0
    %1213 = vmatpush.msra.mxu0 0.0
    %1214 = vmatpush.msra.mxu0 0.0
    %1215 = vmatpush.msra.mxu0 0.0
    %1216 = vmatpush.msra.mxu0 0.0
    %1217 = vmatpush.msra.mxu0 %v62
    %1218 = vmatpush.msra.mxu0 %v61
    %1219 = vmatpush.msra.mxu0 %v60
    %1220 = vmatpush.msra.mxu0 %v59
    %1221 = vmatmul.f32.gmra.mxu0 %v1203
    %v1222 = vpop.f32.mrf.mxu0
    %v1223 = vadd.f32 0.0, %v1222
    %1224 = vdwg.mxu0
    %v1225 = vadd.f32 %v1135, %v1223
    %v1226 = vxor.u32 %v1225, 2147483648
    %v1227 = vmul.f32 %v1226, 1.442695
    %v1228 = vpow.pop %v1227
    %v1229 = vadd.f32 %v1228, 1.0
    %v1230 = vrcp.pop %v1229
    %v1231 = vmul.f32 %v1229, %v1230
    %v1232 = vsub.f32 1.0, %v1231
    %v1233 = vmul.f32 %v1230, %v1232
    %v1234 = vadd.f32 %v1230, %v1233
    %vm1235 = vweird.f32 %v1229
    %vm1236 = vweird.f32 %v1230
    %vm1237 = vmor %vm1235, %vm1236
    %v1238 = vsel %vm1237, %v1230, %v1234
    %v1239 = vand.u32 2147483647, %v1229
    %vm1240 = vcmp.eq.f32.partialorder %v1239, 8.507059e+37
    %v1241 = vand.u32 %v1229, 2147483648
    %v1242 = vor.u32 1.1754944e-38, %v1241
    %v1243 = vsel %vm1240, %v1242, %v1238
    %v1244 = vmul.f32 1.0, %v1243
    %v1245 = vtanh.pop %v1225
    %v1246 = vmul.f32 %v1244, %v1193
    %1248 = vrot.lane.b32.xlu0 %v1245, 32
    %v1249 = vpop.permute.xlu0 %1248
    %v1251 = vmul.f32 %v1244, %v1249
    %1253 = vrot.lane.b32.xlu0 %v1251, 32
    %v1254 = vpop.permute.xlu0 %1253
    %v1256 = vadd.f32 %v1246, %v1254
    %v1257 = vtanh.pop %v1256
    %1259 = vrot.lane.b32.xlu0 %v1257, 32
    %v1260 = vpop.permute.xlu0 %1259
    %v1262 = vmul.f32 %v1244, %v1260
    %v1263 = vld [vmem:[%s7] sm:$0xff]
    %v1264 = vld [vmem:[%s7 + $0x8] sm:$0xff]
    %v1265 = vld [vmem:[%s7 + $0x10] sm:$0xff]
    %v1266 = vld [vmem:[%s7 + $0x18] sm:$0xff]
    %v1267 = vld [vmem:[%s8] sm:$0x1]
    %v1269 = vperm.slane %v1267, 0
    %1272 = vrot.lane.b32.xlu0 %v1262, 64
    %v1273 = vpop.permute.xlu0 %1272
    %v1274 = vsel %vm179, %v1273, 0
    %1276 = vmatpush.msra.mxu0 0.0
    %1277 = vmatpush.msra.mxu0 0.0
    %1278 = vmatpush.msra.mxu0 0.0
    %1279 = vmatpush.msra.mxu0 0.0
    %1280 = vmatpush.msra.mxu0 0.0
    %1281 = vmatpush.msra.mxu0 0.0
    %1282 = vmatpush.msra.mxu0 0.0
    %1283 = vmatpush.msra.mxu0 0.0
    %1284 = vmatpush.msra.mxu0 0.0
    %1285 = vmatpush.msra.mxu0 0.0
    %1286 = vmatpush.msra.mxu0 0.0
    %1287 = vmatpush.msra.mxu0 0.0
    %1288 = vmatpush.msra.mxu0 %v1266
    %1289 = vmatpush.msra.mxu0 %v1265
    %1290 = vmatpush.msra.mxu0 %v1264
    %1291 = vmatpush.msra.mxu0 %v1263
    %1292 = vmatmul.f32.gmra.mxu0 %v1274
    %v1293 = vpop.f32.mrf.mxu0
    %v1294 = vadd.f32 %v1269, %v1293
    %1295 = vdwg.mxu0
    %vm1296 = vcmask 64512
    %1297 = vst.msk [vmem:[#allocation5] sm:$0xff] %vm1296, %v1294
    // Predicated region
    $region42: #{tpu_custom_call.1} parent=1 // pred_check
      _
    $region43: #{tpu_custom_call.1} parent=1 // pred_check_branch
      %1299 = sbr.rel (0) target = $region45
    $region44: #{tpu_custom_call.1} parent=1 // pred_region
      %1301 = vsyncadd [#allocation4], 0
      %s1303 = sshll.u32 [#allocation5], 4
      %s1304 = int_to_ptr.vmem [resolvable:$true] %s1303
      %s1305 = sshll.u32 %s9, 4
      %s1306 = int_to_ptr.hbm [resolvable:$true] %s1305
      %1308 = dma.vmem_to_hbm [thread:$0]  %s1304, 128, %s1306, [#allocation4]
    $region45: #{tpu_custom_call.1} parent=1 // pred_fallthru
      _
    // Predicated region
    $region46: #{tpu_custom_call.1} parent=1 // pred_check
      _
    $region47: #{tpu_custom_call.1} parent=1 // pred_check_branch
      %1310 = sbr.rel (0) target = $region49
    $region48: #{tpu_custom_call.1} parent=1 // pred_region
      %1312 = dma.done [#allocation4], 128
    $region49: #{tpu_custom_call.1} parent=1 // pred_fallthru
      _
    %1313 = vsyncpa [#allocation3], 1
    %1314 = vsyncpa [#allocation4], 1

</llo_original>
